<compile_context>
chip_gen: v5e
topology: v5e:2x2
jax: 0.10.0
libtpu: 0.0.40
codegen_flags: <defaults>
</compile_context>

<pallas_src>
import functools
import math

import jax
import jax.numpy as jnp
from jax import lax
from jax.experimental import pallas as pl
from jax.experimental.pallas import tpu as pltpu


def roberta_stack_kernel(x_ref, valid_ref,
                         wqkv_ref, bqkv_ref, wo_ref, bo_ref,
                         g1_ref, be1_ref,
                         w1_ref, b1_ref, w2_ref, b2_ref,
                         g2_ref, be2_ref,
                         out_ref, mask_ref, *, num_heads, ffn_block):
    layer = pl.program_id(1)

    BS, H = out_ref.shape                   # rows = Bb*S, hidden
    B = valid_ref.shape[0]                  # batch rows in this block
    S = BS // B
    nh = num_heads
    dh = H // nh
    F = w1_ref.shape[-1]
    T = ffn_block
    mm = jnp.bfloat16                       # MXU input dtype (f32 accumulate)

    # First layer of this batch block: seed the resident activation (the output
    # block stays in VMEM across the whole layer axis) and build the
    # layer-invariant key keep-mask once.
    @pl.when(layer == 0)
    def _seed():
        out_ref[...] = x_ref[...]
        key_pos = lax.broadcasted_iota(jnp.int32, (B, 1, S), 2)
        valid = valid_ref[...].reshape(B, 1, 1)
        mask_ref[...] = jnp.where(key_pos < valid, 1.0, 0.0).astype(jnp.float32)

    x = out_ref[...]                        # (BS, H) f32, VMEM resident
    x_mm = x.astype(mm)

    # --- fused Q/K/V projection: one (BS,H) x (H,3H) MXU matmul ---
    qkv = jnp.dot(x_mm, wqkv_ref[0],
                  preferred_element_type=jnp.float32) + bqkv_ref[0]   # (BS, 3H)

    keep = mask_ref[...] > 0.0              # (B,1,S); broadcasts over queries
    scale = jnp.float32(1.0 / math.sqrt(dh))
    neg_big = jnp.float32(-1e6)             # d2l masked_softmax mask value

    # --- multi-head attention: per-head 3-D einsums, no concat / transpose ---
    attn = None
    for h in range(nh):
        # 1/sqrt(dh) folded into q (touches S/dh fewer elems than the scores).
        q_h = (qkv[:, h * dh:(h + 1) * dh] * scale).reshape(B, S, dh).astype(mm)
        k_h = qkv[:, H + h * dh:H + (h + 1) * dh].reshape(B, S, dh).astype(mm)
        v_h = qkv[:, 2 * H + h * dh:2 * H + (h + 1) * dh].reshape(B, S, dh).astype(mm)

        s = jnp.einsum("bqd,bkd->bqk", q_h, k_h,
                       preferred_element_type=jnp.float32)            # (B,S,S)
        s = jnp.where(keep, s, neg_big)
        m = jnp.max(s, axis=-1, keepdims=True)
        e = jnp.exp(s - m)                                            # unnormalised
        ctx = jnp.einsum("bqk,bkd->bqd", e.astype(mm), v_h,
                         preferred_element_type=jnp.float32)          # (B,S,dh)
        inv_l = pl.reciprocal(jnp.sum(e, axis=-1, keepdims=True), approx=True)
        ctx = (ctx * inv_l).reshape(BS, dh)                           # normalise post P@V

        # Concat-free head merge: Wo applied to concatenated heads equals the
        # sum of per-head (dh,H) row-blocks of Wo.
        part = jnp.dot(ctx.astype(mm), wo_ref[0, h * dh:(h + 1) * dh, :],
                       preferred_element_type=jnp.float32)
        attn = part if attn is None else attn + part
    attn = attn + bo_ref[0]

    # --- AddNorm 1 (LayerNorm over H, eps = 1e-5, f32 math) ---
    y = x + attn
    mu = jnp.mean(y, axis=-1, keepdims=True)
    var = jnp.mean(jnp.square(y - mu), axis=-1, keepdims=True)
    y = (y - mu) * lax.rsqrt(var + 1e-5) * g1_ref[0] + be1_ref[0]

    # --- position-wise FFN, tiled over the F dimension ---
    # TODO(synk): at realistic sizes also tile attention over the KV axis
    # (flash-style online softmax) if (B,S,S) per head exceeds the VMEM budget.
    y_mm = y.astype(mm)
    ff = None
    for c in range(F // T):
        w1c = w1_ref[0, :, c * T:(c + 1) * T]                         # (H, T)
        b1c = b1_ref[0, :, c * T:(c + 1) * T]                         # (1, T)
        hid = jnp.maximum(jnp.dot(y_mm, w1c,
                                  preferred_element_type=jnp.float32) + b1c, 0.0)
        part = jnp.dot(hid.astype(mm), w2_ref[0, c * T:(c + 1) * T, :],
                       preferred_element_type=jnp.float32)
        ff = part if ff is None else ff + part
    ff = ff + b2_ref[0]

    # --- AddNorm 2 ---
    z = y + ff
    mu2 = jnp.mean(z, axis=-1, keepdims=True)
    var2 = jnp.mean(jnp.square(z - mu2), axis=-1, keepdims=True)
    z = (z - mu2) * lax.rsqrt(var2 + 1e-5) * g2_ref[0] + be2_ref[0]

    out_ref[...] = z      # stays VMEM-resident for the next layer; Pallas only
                          # writes HBM when the batch-block index changes.


def roberta_encoder_stack(x, valid_lens, stacked, num_heads,
                          batch_blocks=1, ffn_block=None):
    """Run the full encoder stack in one pallas_call.

    x: (B, S, H) f32; valid_lens: (B,) int; stacked: dict of (L, ...) params.
    batch_blocks: "parallel" shards of the batch axis (use 2 on v7x for both
    TensorCores; keep 1 on v5e/v6e).  ffn_block: F-tile for the FFN (None=F).
    """
    B, S, H = x.shape
    L = stacked["wqkv"].shape[0]
    F = stacked["w1"].shape[-1]
    if ffn_block is None:
        ffn_block = F
    assert F % ffn_block == 0
    assert H % num_heads == 0
    assert B % batch_blocks == 0
    Bb = B // batch_blocks
    assert (Bb * S) % 8 == 0 or batch_blocks == 1

    x2 = x.reshape(B * S, H)                          # sublane-dense slab
    valid2 = valid_lens.reshape(B, 1).astype(jnp.int32)

    def batch_map(b, l):      # constant along the layer axis -> VMEM resident
        return (b, 0)

    def layer_map(b, l):      # stream this layer's weights; next one prefetched
        return (l, 0, 0)

    def wspec(shape):
        return pl.BlockSpec((1,) + shape, layer_map)

    in_specs = [
        pl.BlockSpec((Bb * S, H), batch_map),         # activations (seed)
        pl.BlockSpec((Bb, 1), batch_map),             # valid lens
        wspec((H, 3 * H)), wspec((1, 3 * H)),         # fused wqkv, bqkv
        wspec((H, H)), wspec((1, H)),                 # wo, bo
        wspec((1, H)), wspec((1, H)),                 # gamma1, beta1
        wspec((H, F)), wspec((1, F)),                 # w1, b1
        wspec((F, H)), wspec((1, H)),                 # w2, b2
        wspec((1, H)), wspec((1, H)),                 # gamma2, beta2
    ]

    grid_spec = pltpu.PrefetchScalarGridSpec(
        num_scalar_prefetch=0,
        grid=(batch_blocks, L),                       # (parallel batch, serial layers)
        in_specs=in_specs,
        out_specs=pl.BlockSpec((Bb * S, H), batch_map),
        scratch_shapes=[pltpu.VMEM((Bb, 1, S), jnp.float32)],  # key keep-mask
    )

    # --- VMEM budget from actual block sizes (double-buffered weights + slab +
    # transients), with headroom; clamped to what every chip generation has.
    rows, dh = Bb * S, H // num_heads
    w_bytes = (H * 3 * H + H * H + H * F + F * H) * 2 \
        + (3 * H + H + F + 4 * H) * 4
    act_block = rows * H * 4
    attn_tmp = rows * 3 * H * 4 + 3 * rows * dh * 6 \
        + 2 * Bb * S * S * 4 + rows * dh * 4 + 2 * rows * H * 4
    ffn_tmp = 2 * rows * ffn_block * 4 + 2 * rows * H * 4
    est = 2 * w_bytes + 4 * act_block + attn_tmp + ffn_tmp + (1 << 20)
    vmem_limit = int(min(max(est * 13 // 10, 32 << 20), 64 << 20))

    # Advisory cost estimate for XLA scheduling around the custom call.
    flops = L * (6 * B * S * H * H + 2 * B * S * H * H
                 + 4 * B * S * S * H + 4 * B * S * H * F)
    transcendentals = L * num_heads * B * S * S
    weight_bytes = sum(int(v.size) * v.dtype.itemsize for v in stacked.values())
    bytes_accessed = int(2 * B * S * H * 4 + batch_blocks * weight_bytes + B * 4)

    out = pl.pallas_call(
        functools.partial(roberta_stack_kernel, num_heads=num_heads,
                          ffn_block=ffn_block),
        out_shape=jax.ShapeDtypeStruct((B * S, H), jnp.float32),
        grid_spec=grid_spec,
        compiler_params=pltpu.CompilerParams(
            dimension_semantics=("parallel", "arbitrary"),
            vmem_limit_bytes=vmem_limit,
        ),
        cost_estimate=pl.CostEstimate(flops=int(flops),
                                      transcendentals=int(transcendentals),
                                      bytes_accessed=bytes_accessed),
    )(x2, valid2,
      stacked["wqkv"], stacked["bqkv"], stacked["wo"], stacked["bo"],
      stacked["g1"], stacked["be1"], stacked["w1"], stacked["b1"],
      stacked["w2"], stacked["b2"], stacked["g2"], stacked["be2"])
    return out.reshape(B, S, H)


def stack_block_params(blocks):
    """Stack per-layer params along a leading L axis; fuse Wq/Wk/Wv into (H,3H).

    MXU weights are stored bf16 (halves weight DMA); biases / layer-norm affine
    parameters stay f32 since all elementwise math runs in f32.
    """
    def stack(k):
        return jnp.stack([blk[k] for blk in blocks], axis=0)

    wqkv = jnp.concatenate([stack("wq"), stack("wk"), stack("wv")], axis=-1)
    bqkv = jnp.concatenate([stack("bq"), stack("bk"), stack("bv")], axis=-1)
    return {
        "wqkv": wqkv.astype(jnp.bfloat16),
        "bqkv": bqkv.astype(jnp.float32),
        "wo": stack("wo").astype(jnp.bfloat16), "bo": stack("bo"),
        "g1": stack("g1"), "be1": stack("be1"),
        "w1": stack("w1").astype(jnp.bfloat16), "b1": stack("b1"),
        "w2": stack("w2").astype(jnp.bfloat16), "b2": stack("b2"),
        "g2": stack("g2"), "be2": stack("be2"),
    }


def init_params(key, vocab_size, num_hiddens, ffn_num_hiddens, num_layers, max_len):
    H, F = num_hiddens, ffn_num_hiddens
    keys = jax.random.split(key, 2 + num_layers)
    params = {
        "token_embedding": 0.02 * jax.random.normal(keys[0], (vocab_size, H), jnp.float32),
        "pos_embedding": 0.02 * jax.random.normal(keys[1], (1, max_len, H), jnp.float32),
        "blocks": [],
    }
    for i in range(num_layers):
        ks = jax.random.split(keys[2 + i], 6)
        blk = {
            "wq": 0.02 * jax.random.normal(ks[0], (H, H), jnp.float32), "bq": jnp.zeros((1, H), jnp.float32),
            "wk": 0.02 * jax.random.normal(ks[1], (H, H), jnp.float32), "bk": jnp.zeros((1, H), jnp.float32),
            "wv": 0.02 * jax.random.normal(ks[2], (H, H), jnp.float32), "bv": jnp.zeros((1, H), jnp.float32),
            "wo": 0.02 * jax.random.normal(ks[3], (H, H), jnp.float32), "bo": jnp.zeros((1, H), jnp.float32),
            "g1": jnp.ones((1, H), jnp.float32), "be1": jnp.zeros((1, H), jnp.float32),
            "w1": 0.02 * jax.random.normal(ks[4], (H, F), jnp.float32), "b1": jnp.zeros((1, F), jnp.float32),
            "w2": 0.02 * jax.random.normal(ks[5], (F, H), jnp.float32), "b2": jnp.zeros((1, H), jnp.float32),
            "g2": jnp.ones((1, H), jnp.float32), "be2": jnp.zeros((1, H), jnp.float32),
        }
        params["blocks"].append(blk)
    return params


def roberta_encoder_forward(tokens, valid_lens, params, num_heads,
                            batch_blocks=1, ffn_block=None):
    # Glue in plain JAX: embedding gather + learned positional embedding.
    # TODO(synk): the token-embedding gather stays in XLA (jnp.take); it could
    # be fused via a pl.Element row-gather BlockSpec if it becomes a bottleneck.
    x = jnp.take(params["token_embedding"], tokens, axis=0)          # (B, S, H)
    x = x + params["pos_embedding"][:, : tokens.shape[1], :]
    stacked = stack_block_params(params["blocks"])
    return roberta_encoder_stack(x, valid_lens, stacked, num_heads,
                                 batch_blocks=batch_blocks, ffn_block=ffn_block)


if __name__ == "__main__":
    vocab_size = 50
    num_hiddens = 32          # norm_shape = [32], ffn_num_input = 32
    ffn_num_hiddens = 64
    num_heads = 2
    num_layers = 2
    max_len = 16
    batch, seq = 2, 8

    root = jax.random.PRNGKey(0)
    k_param, k_tok = jax.random.split(root)
    params = init_params(k_param, vocab_size, num_hiddens, ffn_num_hiddens,
                         num_layers, max_len)

    tokens = jax.random.randint(k_tok, (batch, seq), 0, vocab_size, dtype=jnp.int32)
    valid_lens = jnp.array([8, 5], dtype=jnp.int32)

    fwd = jax.jit(roberta_encoder_forward,
                  static_argnames=("num_heads", "batch_blocks", "ffn_block"))
    out = fwd(tokens, valid_lens, params, num_heads=num_heads)
    out = jax.block_until_ready(out)
    assert out.shape == (batch, seq, num_hiddens)
    assert bool(jnp.all(jnp.isfinite(out)))
    print("KERNEL_OK")
</pallas_src>

<mosaic_0001>
module attributes {stable_mosaic.version = 11 : i64} {
  func.func @roberta_stack_kernel(%arg0: i32, %arg1: i32, %arg2: memref<16x32xf32, #tpu.memory_space<vmem>>, %arg3: memref<2x1xi32, #tpu.memory_space<vmem>>, %arg4: memref<1x32x96xbf16, #tpu.memory_space<vmem>>, %arg5: memref<1x1x96xf32, #tpu.memory_space<vmem>>, %arg6: memref<1x32x32xbf16, #tpu.memory_space<vmem>>, %arg7: memref<1x1x32xf32, #tpu.memory_space<vmem>>, %arg8: memref<1x1x32xf32, #tpu.memory_space<vmem>>, %arg9: memref<1x1x32xf32, #tpu.memory_space<vmem>>, %arg10: memref<1x32x64xbf16, #tpu.memory_space<vmem>>, %arg11: memref<1x1x64xf32, #tpu.memory_space<vmem>>, %arg12: memref<1x64x32xbf16, #tpu.memory_space<vmem>>, %arg13: memref<1x1x32xf32, #tpu.memory_space<vmem>>, %arg14: memref<1x1x32xf32, #tpu.memory_space<vmem>>, %arg15: memref<1x1x32xf32, #tpu.memory_space<vmem>>, %arg16: memref<16x32xf32, #tpu.memory_space<vmem>>, %arg17: memref<2x1x8xf32, #tpu.memory_space<vmem>>) attributes {dimension_semantics = [#tpu.dimension_semantics<parallel>, #tpu.dimension_semantics<arbitrary>], iteration_bounds = array<i64: 1, 2>, scalar_prefetch = 0 : i64, scratch_operands = 1 : i64, tpu.core_type = #tpu.core_type<tc>, window_params = [{transform_indices = @transform_0, window_bounds = array<i64: 16, 32>}, {transform_indices = @transform_1, window_bounds = array<i64: 2, 1>}, {transform_indices = @transform_2, window_bounds = array<i64: 1, 32, 96>}, {transform_indices = @transform_3, window_bounds = array<i64: 1, 1, 96>}, {transform_indices = @transform_4, window_bounds = array<i64: 1, 32, 32>}, {transform_indices = @transform_5, window_bounds = array<i64: 1, 1, 32>}, {transform_indices = @transform_6, window_bounds = array<i64: 1, 1, 32>}, {transform_indices = @transform_7, window_bounds = array<i64: 1, 1, 32>}, {transform_indices = @transform_8, window_bounds = array<i64: 1, 32, 64>}, {transform_indices = @transform_9, window_bounds = array<i64: 1, 1, 64>}, {transform_indices = @transform_10, window_bounds = array<i64: 1, 64, 32>}, {transform_indices = @transform_11, window_bounds = array<i64: 1, 1, 32>}, {transform_indices = @transform_12, window_bounds = array<i64: 1, 1, 32>}, {transform_indices = @transform_13, window_bounds = array<i64: 1, 1, 32>}, {transform_indices = @transform_14, window_bounds = array<i64: 16, 32>}]} {
    %c0_i32 = arith.constant 0 : i32
    %0 = arith.cmpi eq, %arg1, %c0_i32 : i32
    %1 = arith.extui %0 : i1 to i32
    %c0_i32_0 = arith.constant 0 : i32
    %2 = arith.cmpi ne, %1, %c0_i32_0 : i32
    scf.if %2 {
      %c0_73 = arith.constant 0 : index
      %c0_74 = arith.constant 0 : index
      %159 = vector.load %arg2[%c0_73, %c0_74] : memref<16x32xf32, #tpu.memory_space<vmem>>, vector<16x32xf32>
      %c0_75 = arith.constant 0 : index
      %c0_76 = arith.constant 0 : index
      %160 = vector.load %arg16[%c0_75, %c0_76] : memref<16x32xf32, #tpu.memory_space<vmem>>, vector<16x32xf32>
      tpu.vector_store %arg16[%c0_75, %c0_76], %159 {strides = array<i32>} : memref<16x32xf32, #tpu.memory_space<vmem>>, vector<16x32xf32>,
      %161 = tpu.iota {dimensions = array<i32: 2>} : vector<2x1x8xi32>
      %c0_77 = arith.constant 0 : index
      %c0_78 = arith.constant 0 : index
      %162 = vector.load %arg3[%c0_77, %c0_78] : memref<2x1xi32, #tpu.memory_space<vmem>>, vector<2x1xi32>
      %163 = vector.shape_cast %162 : vector<2x1xi32> to vector<2x1x1xi32>
      %164 = vector.broadcast %163 : vector<2x1x1xi32> to vector<2x1x8xi32>
      %165 = arith.cmpi slt, %161, %164 : vector<2x1x8xi32>
      %cst_79 = arith.constant 1.000000e+00 : f32
      %cst_80 = arith.constant 0.000000e+00 : f32
      %166 = vector.broadcast %cst_79 : f32 to vector<2x1x8xf32>
      %167 = vector.broadcast %cst_80 : f32 to vector<2x1x8xf32>
      %168 = arith.select %165, %166, %167 : vector<2x1x8xi1>, vector<2x1x8xf32>
      %c0_81 = arith.constant 0 : index
      %c0_82 = arith.constant 0 : index
      %c0_83 = arith.constant 0 : index
      %169 = vector.load %arg17[%c0_81, %c0_82, %c0_83] : memref<2x1x8xf32, #tpu.memory_space<vmem>>, vector<2x1x8xf32>
      tpu.vector_store %arg17[%c0_81, %c0_82, %c0_83], %168 {strides = array<i32>} : memref<2x1x8xf32, #tpu.memory_space<vmem>>, vector<2x1x8xf32>,
    } else {
    }
    %c0 = arith.constant 0 : index
    %c0_1 = arith.constant 0 : index
    %3 = vector.load %arg16[%c0, %c0_1] : memref<16x32xf32, #tpu.memory_space<vmem>>, vector<16x32xf32>
    %4 = arith.truncf %3 : vector<16x32xf32> to vector<16x32xbf16>
    %c0_2 = arith.constant 0 : index
    %c0_3 = arith.constant 0 : index
    %c0_4 = arith.constant 0 : index
    %5 = vector.load %arg4[%c0_2, %c0_3, %c0_4] : memref<1x32x96xbf16, #tpu.memory_space<vmem>>, vector<1x32x96xbf16>
    %6 = vector.shape_cast %5 : vector<1x32x96xbf16> to vector<32x96xbf16>
    %cst = arith.constant dense<0.000000e+00> : vector<16x96xf32>
    %7 = tpu.matmul %4, %6, %cst {dimension_numbers = #tpu.dot_dimension_numbers<[1], [0], [0], [1], [0, 0, 1, 1], [], []>} : vector<16x32xbf16>, vector<32x96xbf16>, vector<16x96xf32> -> vector<16x96xf32>
    %c0_5 = arith.constant 0 : index
    %c0_6 = arith.constant 0 : index
    %c0_7 = arith.constant 0 : index
    %8 = vector.load %arg5[%c0_5, %c0_6, %c0_7] : memref<1x1x96xf32, #tpu.memory_space<vmem>>, vector<1x1x96xf32>
    %9 = vector.shape_cast %8 : vector<1x1x96xf32> to vector<1x96xf32>
    %10 = vector.broadcast %9 : vector<1x96xf32> to vector<16x96xf32>
    %11 = arith.addf %7, %10 : vector<16x96xf32>
    %c0_8 = arith.constant 0 : index
    %c0_9 = arith.constant 0 : index
    %c0_10 = arith.constant 0 : index
    %12 = vector.load %arg17[%c0_8, %c0_9, %c0_10] : memref<2x1x8xf32, #tpu.memory_space<vmem>>, vector<2x1x8xf32>
    %cst_11 = arith.constant 0.000000e+00 : f32
    %13 = vector.broadcast %cst_11 : f32 to vector<2x1x8xf32>
    %14 = arith.cmpf ogt, %12, %13 : vector<2x1x8xf32>
    %15 = vector.extract_strided_slice %11 {offsets = [0, 0], sizes = [16, 16], strides = [1, 1]} : vector<16x96xf32> to vector<16x16xf32>
    %cst_12 = arith.constant 2.500000e-01 : f32
    %16 = vector.broadcast %cst_12 : f32 to vector<16x16xf32>
    %17 = arith.mulf %15, %16 : vector<16x16xf32>
    %18 = vector.shape_cast %17 : vector<16x16xf32> to vector<2x8x16xf32>
    %19 = arith.truncf %18 : vector<2x8x16xf32> to vector<2x8x16xbf16>
    %20 = vector.extract_strided_slice %11 {offsets = [0, 32], sizes = [16, 16], strides = [1, 1]} : vector<16x96xf32> to vector<16x16xf32>
    %21 = vector.shape_cast %20 : vector<16x16xf32> to vector<2x8x16xf32>
    %22 = arith.truncf %21 : vector<2x8x16xf32> to vector<2x8x16xbf16>
    %23 = vector.extract_strided_slice %11 {offsets = [0, 64], sizes = [16, 16], strides = [1, 1]} : vector<16x96xf32> to vector<16x16xf32>
    %24 = vector.shape_cast %23 : vector<16x16xf32> to vector<2x8x16xf32>
    %25 = arith.truncf %24 : vector<2x8x16xf32> to vector<2x8x16xbf16>
    "tpu.trace_start"() <{level = 10 : i32, message = "bqd,bkd->bqk"}> : () -> ()
    %cst_13 = arith.constant dense<0.000000e+00> : vector<2x8x8xf32>
    %26 = tpu.matmul %19, %22, %cst_13 {dimension_numbers = #tpu.dot_dimension_numbers<[2], [2], [1], [1], [0, 0, 0, 1, 1, 1], [0], [0]>} : vector<2x8x16xbf16>, vector<2x8x16xbf16>, vector<2x8x8xf32> -> vector<2x8x8xf32>
    %cst_14 = arith.constant -1.000000e+06 : f32
    "tpu.trace_stop"() : () -> ()
    %27 = vector.shape_cast %14 : vector<2x1x8xi1> to vector<2x1x8xi1>
    %28 = vector.broadcast %27 : vector<2x1x8xi1> to vector<2x8x8xi1>
    %29 = vector.broadcast %cst_14 : f32 to vector<2x8x8xf32>
    %30 = arith.select %28, %26, %29 : vector<2x8x8xi1>, vector<2x8x8xf32>
    %cst_15 = arith.constant dense<0xFF800000> : vector<2x8xf32>
    %31 = vector.multi_reduction <maximumf>, %30, %cst_15 [2] : vector<2x8x8xf32> to vector<2x8xf32>
    %32 = vector.shape_cast %31 : vector<2x8xf32> to vector<2x8x1xf32>
    %33 = vector.broadcast %32 : vector<2x8x1xf32> to vector<2x8x8xf32>
    %34 = arith.subf %30, %33 : vector<2x8x8xf32>
    %35 = math.exp %34 : vector<2x8x8xf32>
    %36 = arith.truncf %35 : vector<2x8x8xf32> to vector<2x8x8xbf16>
    "tpu.trace_start"() <{level = 10 : i32, message = "bqk,bkd->bqd"}> : () -> ()
    %cst_16 = arith.constant dense<0.000000e+00> : vector<2x8x16xf32>
    %37 = tpu.matmul %36, %25, %cst_16 {dimension_numbers = #tpu.dot_dimension_numbers<[2], [1], [1], [2], [0, 0, 0, 1, 1, 2], [0], [0]>} : vector<2x8x8xbf16>, vector<2x8x16xbf16>, vector<2x8x16xf32> -> vector<2x8x16xf32>
    "tpu.trace_stop"() : () -> ()
    %cst_17 = arith.constant dense<0.000000e+00> : vector<2x8xf32>
    %38 = vector.multi_reduction <add>, %35, %cst_17 [2] : vector<2x8x8xf32> to vector<2x8xf32>
    %39 = vector.shape_cast %38 : vector<2x8xf32> to vector<2x8x1xf32>
    %40 = tpu.reciprocal %39 {approx = true} : vector<2x8x1xf32> -> vector<2x8x1xf32>
    %41 = vector.broadcast %40 : vector<2x8x1xf32> to vector<2x8x16xf32>
    %42 = arith.mulf %37, %41 : vector<2x8x16xf32>
    %43 = vector.shape_cast %42 : vector<2x8x16xf32> to vector<16x16xf32>
    %44 = arith.truncf %43 : vector<16x16xf32> to vector<16x16xbf16>
    %c0_18 = arith.constant 0 : index
    %c0_19 = arith.constant 0 : index
    %c0_20 = arith.constant 0 : index
    %45 = vector.load %arg6[%c0_18, %c0_19, %c0_20] : memref<1x32x32xbf16, #tpu.memory_space<vmem>>, vector<1x16x32xbf16>
    %46 = vector.shape_cast %45 : vector<1x16x32xbf16> to vector<16x32xbf16>
    %cst_21 = arith.constant dense<0.000000e+00> : vector<16x32xf32>
    %47 = tpu.matmul %44, %46, %cst_21 {dimension_numbers = #tpu.dot_dimension_numbers<[1], [0], [0], [1], [0, 0, 1, 1], [], []>} : vector<16x16xbf16>, vector<16x32xbf16>, vector<16x32xf32> -> vector<16x32xf32>
    %48 = vector.extract_strided_slice %11 {offsets = [0, 16], sizes = [16, 16], strides = [1, 1]} : vector<16x96xf32> to vector<16x16xf32>
    %cst_22 = arith.constant 2.500000e-01 : f32
    %49 = vector.broadcast %cst_22 : f32 to vector<16x16xf32>
    %50 = arith.mulf %48, %49 : vector<16x16xf32>
    %51 = vector.shape_cast %50 : vector<16x16xf32> to vector<2x8x16xf32>
    %52 = arith.truncf %51 : vector<2x8x16xf32> to vector<2x8x16xbf16>
    %53 = vector.extract_strided_slice %11 {offsets = [0, 48], sizes = [16, 16], strides = [1, 1]} : vector<16x96xf32> to vector<16x16xf32>
    %54 = vector.shape_cast %53 : vector<16x16xf32> to vector<2x8x16xf32>
    %55 = arith.truncf %54 : vector<2x8x16xf32> to vector<2x8x16xbf16>
    %56 = vector.extract_strided_slice %11 {offsets = [0, 80], sizes = [16, 16], strides = [1, 1]} : vector<16x96xf32> to vector<16x16xf32>
    %57 = vector.shape_cast %56 : vector<16x16xf32> to vector<2x8x16xf32>
    %58 = arith.truncf %57 : vector<2x8x16xf32> to vector<2x8x16xbf16>
    "tpu.trace_start"() <{level = 10 : i32, message = "bqd,bkd->bqk"}> : () -> ()
    %cst_23 = arith.constant dense<0.000000e+00> : vector<2x8x8xf32>
    %59 = tpu.matmul %52, %55, %cst_23 {dimension_numbers = #tpu.dot_dimension_numbers<[2], [2], [1], [1], [0, 0, 0, 1, 1, 1], [0], [0]>} : vector<2x8x16xbf16>, vector<2x8x16xbf16>, vector<2x8x8xf32> -> vector<2x8x8xf32>
    %cst_24 = arith.constant -1.000000e+06 : f32
    "tpu.trace_stop"() : () -> ()
    %60 = vector.shape_cast %14 : vector<2x1x8xi1> to vector<2x1x8xi1>
    %61 = vector.broadcast %60 : vector<2x1x8xi1> to vector<2x8x8xi1>
    %62 = vector.broadcast %cst_24 : f32 to vector<2x8x8xf32>
    %63 = arith.select %61, %59, %62 : vector<2x8x8xi1>, vector<2x8x8xf32>
    %cst_25 = arith.constant dense<0xFF800000> : vector<2x8xf32>
    %64 = vector.multi_reduction <maximumf>, %63, %cst_25 [2] : vector<2x8x8xf32> to vector<2x8xf32>
    %65 = vector.shape_cast %64 : vector<2x8xf32> to vector<2x8x1xf32>
    %66 = vector.broadcast %65 : vector<2x8x1xf32> to vector<2x8x8xf32>
    %67 = arith.subf %63, %66 : vector<2x8x8xf32>
    %68 = math.exp %67 : vector<2x8x8xf32>
    %69 = arith.truncf %68 : vector<2x8x8xf32> to vector<2x8x8xbf16>
    "tpu.trace_start"() <{level = 10 : i32, message = "bqk,bkd->bqd"}> : () -> ()
    %cst_26 = arith.constant dense<0.000000e+00> : vector<2x8x16xf32>
    %70 = tpu.matmul %69, %58, %cst_26 {dimension_numbers = #tpu.dot_dimension_numbers<[2], [1], [1], [2], [0, 0, 0, 1, 1, 2], [0], [0]>} : vector<2x8x8xbf16>, vector<2x8x16xbf16>, vector<2x8x16xf32> -> vector<2x8x16xf32>
    "tpu.trace_stop"() : () -> ()
    %cst_27 = arith.constant dense<0.000000e+00> : vector<2x8xf32>
    %71 = vector.multi_reduction <add>, %68, %cst_27 [2] : vector<2x8x8xf32> to vector<2x8xf32>
    %72 = vector.shape_cast %71 : vector<2x8xf32> to vector<2x8x1xf32>
    %73 = tpu.reciprocal %72 {approx = true} : vector<2x8x1xf32> -> vector<2x8x1xf32>
    %74 = vector.broadcast %73 : vector<2x8x1xf32> to vector<2x8x16xf32>
    %75 = arith.mulf %70, %74 : vector<2x8x16xf32>
    %76 = vector.shape_cast %75 : vector<2x8x16xf32> to vector<16x16xf32>
    %77 = arith.truncf %76 : vector<16x16xf32> to vector<16x16xbf16>
    %c0_28 = arith.constant 0 : index
    %c16 = arith.constant 16 : index
    %c0_29 = arith.constant 0 : index
    %78 = vector.load %arg6[%c0_28, %c16, %c0_29] : memref<1x32x32xbf16, #tpu.memory_space<vmem>>, vector<1x16x32xbf16>
    %79 = vector.shape_cast %78 : vector<1x16x32xbf16> to vector<16x32xbf16>
    %cst_30 = arith.constant dense<0.000000e+00> : vector<16x32xf32>
    %80 = tpu.matmul %77, %79, %cst_30 {dimension_numbers = #tpu.dot_dimension_numbers<[1], [0], [0], [1], [0, 0, 1, 1], [], []>} : vector<16x16xbf16>, vector<16x32xbf16>, vector<16x32xf32> -> vector<16x32xf32>
    %81 = arith.addf %47, %80 : vector<16x32xf32>
    %c0_31 = arith.constant 0 : index
    %c0_32 = arith.constant 0 : index
    %c0_33 = arith.constant 0 : index
    %82 = vector.load %arg7[%c0_31, %c0_32, %c0_33] : memref<1x1x32xf32, #tpu.memory_space<vmem>>, vector<1x1x32xf32>
    %83 = vector.shape_cast %82 : vector<1x1x32xf32> to vector<1x32xf32>
    %84 = vector.broadcast %83 : vector<1x32xf32> to vector<16x32xf32>
    %85 = arith.addf %81, %84 : vector<16x32xf32>
    %86 = arith.addf %3, %85 : vector<16x32xf32>
    %cst_34 = arith.constant dense<0.000000e+00> : vector<16xf32>
    %87 = vector.multi_reduction <add>, %86, %cst_34 [1] : vector<16x32xf32> to vector<16xf32>
    %88 = vector.shape_cast %87 : vector<16xf32> to vector<16x1xf32>
    %cst_35 = arith.constant 3.200000e+01 : f32
    %89 = vector.broadcast %cst_35 : f32 to vector<16x1xf32>
    %90 = arith.divf %88, %89 : vector<16x1xf32>
    %91 = vector.broadcast %90 : vector<16x1xf32> to vector<16x32xf32>
    %92 = arith.subf %86, %91 : vector<16x32xf32>
    %93 = arith.mulf %92, %92 : vector<16x32xf32>
    %cst_36 = arith.constant dense<0.000000e+00> : vector<16xf32>
    %94 = vector.multi_reduction <add>, %93, %cst_36 [1] : vector<16x32xf32> to vector<16xf32>
    %95 = vector.shape_cast %94 : vector<16xf32> to vector<16x1xf32>
    %cst_37 = arith.constant 3.200000e+01 : f32
    %96 = vector.broadcast %cst_37 : f32 to vector<16x1xf32>
    %97 = arith.divf %95, %96 : vector<16x1xf32>
    %98 = vector.broadcast %90 : vector<16x1xf32> to vector<16x32xf32>
    %99 = arith.subf %86, %98 : vector<16x32xf32>
    %cst_38 = arith.constant 9.99999974E-6 : f32
    %100 = vector.broadcast %cst_38 : f32 to vector<16x1xf32>
    %101 = arith.addf %97, %100 : vector<16x1xf32>
    %102 = math.rsqrt %101 : vector<16x1xf32>
    %103 = vector.broadcast %102 : vector<16x1xf32> to vector<16x32xf32>
    %104 = arith.mulf %99, %103 : vector<16x32xf32>
    %c0_39 = arith.constant 0 : index
    %c0_40 = arith.constant 0 : index
    %c0_41 = arith.constant 0 : index
    %105 = vector.load %arg8[%c0_39, %c0_40, %c0_41] : memref<1x1x32xf32, #tpu.memory_space<vmem>>, vector<1x1x32xf32>
    %106 = vector.shape_cast %105 : vector<1x1x32xf32> to vector<1x32xf32>
    %107 = vector.broadcast %106 : vector<1x32xf32> to vector<16x32xf32>
    %108 = arith.mulf %104, %107 : vector<16x32xf32>
    %c0_42 = arith.constant 0 : index
    %c0_43 = arith.constant 0 : index
    %c0_44 = arith.constant 0 : index
    %109 = vector.load %arg9[%c0_42, %c0_43, %c0_44] : memref<1x1x32xf32, #tpu.memory_space<vmem>>, vector<1x1x32xf32>
    %110 = vector.shape_cast %109 : vector<1x1x32xf32> to vector<1x32xf32>
    %111 = vector.broadcast %110 : vector<1x32xf32> to vector<16x32xf32>
    %112 = arith.addf %108, %111 : vector<16x32xf32>
    %113 = arith.truncf %112 : vector<16x32xf32> to vector<16x32xbf16>
    %c0_45 = arith.constant 0 : index
    %c0_46 = arith.constant 0 : index
    %c0_47 = arith.constant 0 : index
    %114 = vector.load %arg10[%c0_45, %c0_46, %c0_47] : memref<1x32x64xbf16, #tpu.memory_space<vmem>>, vector<1x32x64xbf16>
    %115 = vector.shape_cast %114 : vector<1x32x64xbf16> to vector<32x64xbf16>
    %c0_48 = arith.constant 0 : index
    %c0_49 = arith.constant 0 : index
    %c0_50 = arith.constant 0 : index
    %116 = vector.load %arg11[%c0_48, %c0_49, %c0_50] : memref<1x1x64xf32, #tpu.memory_space<vmem>>, vector<1x1x64xf32>
    %117 = vector.shape_cast %116 : vector<1x1x64xf32> to vector<1x64xf32>
    %cst_51 = arith.constant dense<0.000000e+00> : vector<16x64xf32>
    %118 = tpu.matmul %113, %115, %cst_51 {dimension_numbers = #tpu.dot_dimension_numbers<[1], [0], [0], [1], [0, 0, 1, 1], [], []>} : vector<16x32xbf16>, vector<32x64xbf16>, vector<16x64xf32> -> vector<16x64xf32>
    %119 = vector.broadcast %117 : vector<1x64xf32> to vector<16x64xf32>
    %120 = arith.addf %118, %119 : vector<16x64xf32>
    %cst_52 = arith.constant 0.000000e+00 : f32
    %121 = vector.broadcast %cst_52 : f32 to vector<16x64xf32>
    %122 = arith.maximumf %120, %121 : vector<16x64xf32>
    %123 = arith.truncf %122 : vector<16x64xf32> to vector<16x64xbf16>
    %c0_53 = arith.constant 0 : index
    %c0_54 = arith.constant 0 : index
    %c0_55 = arith.constant 0 : index
    %124 = vector.load %arg12[%c0_53, %c0_54, %c0_55] : memref<1x64x32xbf16, #tpu.memory_space<vmem>>, vector<1x64x32xbf16>
    %125 = vector.shape_cast %124 : vector<1x64x32xbf16> to vector<64x32xbf16>
    %cst_56 = arith.constant dense<0.000000e+00> : vector<16x32xf32>
    %126 = tpu.matmul %123, %125, %cst_56 {dimension_numbers = #tpu.dot_dimension_numbers<[1], [0], [0], [1], [0, 0, 1, 1], [], []>} : vector<16x64xbf16>, vector<64x32xbf16>, vector<16x32xf32> -> vector<16x32xf32>
    %c0_57 = arith.constant 0 : index
    %c0_58 = arith.constant 0 : index
    %c0_59 = arith.constant 0 : index
    %127 = vector.load %arg13[%c0_57, %c0_58, %c0_59] : memref<1x1x32xf32, #tpu.memory_space<vmem>>, vector<1x1x32xf32>
    %128 = vector.shape_cast %127 : vector<1x1x32xf32> to vector<1x32xf32>
    %129 = vector.broadcast %128 : vector<1x32xf32> to vector<16x32xf32>
    %130 = arith.addf %126, %129 : vector<16x32xf32>
    %131 = arith.addf %112, %130 : vector<16x32xf32>
    %cst_60 = arith.constant dense<0.000000e+00> : vector<16xf32>
    %132 = vector.multi_reduction <add>, %131, %cst_60 [1] : vector<16x32xf32> to vector<16xf32>
    %133 = vector.shape_cast %132 : vector<16xf32> to vector<16x1xf32>
    %cst_61 = arith.constant 3.200000e+01 : f32
    %134 = vector.broadcast %cst_61 : f32 to vector<16x1xf32>
    %135 = arith.divf %133, %134 : vector<16x1xf32>
    %136 = vector.broadcast %135 : vector<16x1xf32> to vector<16x32xf32>
    %137 = arith.subf %131, %136 : vector<16x32xf32>
    %138 = arith.mulf %137, %137 : vector<16x32xf32>
    %cst_62 = arith.constant dense<0.000000e+00> : vector<16xf32>
    %139 = vector.multi_reduction <add>, %138, %cst_62 [1] : vector<16x32xf32> to vector<16xf32>
    %140 = vector.shape_cast %139 : vector<16xf32> to vector<16x1xf32>
    %cst_63 = arith.constant 3.200000e+01 : f32
    %141 = vector.broadcast %cst_63 : f32 to vector<16x1xf32>
    %142 = arith.divf %140, %141 : vector<16x1xf32>
    %143 = vector.broadcast %135 : vector<16x1xf32> to vector<16x32xf32>
    %144 = arith.subf %131, %143 : vector<16x32xf32>
    %cst_64 = arith.constant 9.99999974E-6 : f32
    %145 = vector.broadcast %cst_64 : f32 to vector<16x1xf32>
    %146 = arith.addf %142, %145 : vector<16x1xf32>
    %147 = math.rsqrt %146 : vector<16x1xf32>
    %148 = vector.broadcast %147 : vector<16x1xf32> to vector<16x32xf32>
    %149 = arith.mulf %144, %148 : vector<16x32xf32>
    %c0_65 = arith.constant 0 : index
    %c0_66 = arith.constant 0 : index
    %c0_67 = arith.constant 0 : index
    %150 = vector.load %arg14[%c0_65, %c0_66, %c0_67] : memref<1x1x32xf32, #tpu.memory_space<vmem>>, vector<1x1x32xf32>
    %151 = vector.shape_cast %150 : vector<1x1x32xf32> to vector<1x32xf32>
    %152 = vector.broadcast %151 : vector<1x32xf32> to vector<16x32xf32>
    %153 = arith.mulf %149, %152 : vector<16x32xf32>
    %c0_68 = arith.constant 0 : index
    %c0_69 = arith.constant 0 : index
    %c0_70 = arith.constant 0 : index
    %154 = vector.load %arg15[%c0_68, %c0_69, %c0_70] : memref<1x1x32xf32, #tpu.memory_space<vmem>>, vector<1x1x32xf32>
    %155 = vector.shape_cast %154 : vector<1x1x32xf32> to vector<1x32xf32>
    %156 = vector.broadcast %155 : vector<1x32xf32> to vector<16x32xf32>
    %157 = arith.addf %153, %156 : vector<16x32xf32>
    %c0_71 = arith.constant 0 : index
    %c0_72 = arith.constant 0 : index
    %158 = vector.load %arg16[%c0_71, %c0_72] : memref<16x32xf32, #tpu.memory_space<vmem>>, vector<16x32xf32>
    tpu.vector_store %arg16[%c0_71, %c0_72], %157 {strides = array<i32>} : memref<16x32xf32, #tpu.memory_space<vmem>>, vector<16x32xf32>,
    return
  }
  func.func @transform_0(%arg0: i32, %arg1: i32) -> (i32, i32) {
    %c0_i32 = arith.constant 0 : i32
    %c0_i32_0 = arith.constant 0 : i32
    return %arg0, %c0_i32 : i32, i32
  }
  func.func @transform_1(%arg0: i32, %arg1: i32) -> (i32, i32) {
    %c0_i32 = arith.constant 0 : i32
    %c0_i32_0 = arith.constant 0 : i32
    return %arg0, %c0_i32 : i32, i32
  }
  func.func @transform_2(%arg0: i32, %arg1: i32) -> (i32, i32, i32) {
    %c0_i32 = arith.constant 0 : i32
    %c0_i32_0 = arith.constant 0 : i32
    %c0_i32_1 = arith.constant 0 : i32
    return %arg1, %c0_i32, %c0_i32_0 : i32, i32, i32
  }
  func.func @transform_3(%arg0: i32, %arg1: i32) -> (i32, i32, i32) {
    %c0_i32 = arith.constant 0 : i32
    %c0_i32_0 = arith.constant 0 : i32
    %c0_i32_1 = arith.constant 0 : i32
    return %arg1, %c0_i32, %c0_i32_0 : i32, i32, i32
  }
  func.func @transform_4(%arg0: i32, %arg1: i32) -> (i32, i32, i32) {
    %c0_i32 = arith.constant 0 : i32
    %c0_i32_0 = arith.constant 0 : i32
    %c0_i32_1 = arith.constant 0 : i32
    return %arg1, %c0_i32, %c0_i32_0 : i32, i32, i32
  }
  func.func @transform_5(%arg0: i32, %arg1: i32) -> (i32, i32, i32) {
    %c0_i32 = arith.constant 0 : i32
    %c0_i32_0 = arith.constant 0 : i32
    %c0_i32_1 = arith.constant 0 : i32
    return %arg1, %c0_i32, %c0_i32_0 : i32, i32, i32
  }
  func.func @transform_6(%arg0: i32, %arg1: i32) -> (i32, i32, i32) {
    %c0_i32 = arith.constant 0 : i32
    %c0_i32_0 = arith.constant 0 : i32
    %c0_i32_1 = arith.constant 0 : i32
    return %arg1, %c0_i32, %c0_i32_0 : i32, i32, i32
  }
  func.func @transform_7(%arg0: i32, %arg1: i32) -> (i32, i32, i32) {
    %c0_i32 = arith.constant 0 : i32
    %c0_i32_0 = arith.constant 0 : i32
    %c0_i32_1 = arith.constant 0 : i32
    return %arg1, %c0_i32, %c0_i32_0 : i32, i32, i32
  }
  func.func @transform_8(%arg0: i32, %arg1: i32) -> (i32, i32, i32) {
    %c0_i32 = arith.constant 0 : i32
    %c0_i32_0 = arith.constant 0 : i32
    %c0_i32_1 = arith.constant 0 : i32
    return %arg1, %c0_i32, %c0_i32_0 : i32, i32, i32
  }
  func.func @transform_9(%arg0: i32, %arg1: i32) -> (i32, i32, i32) {
    %c0_i32 = arith.constant 0 : i32
    %c0_i32_0 = arith.constant 0 : i32
    %c0_i32_1 = arith.constant 0 : i32
    return %arg1, %c0_i32, %c0_i32_0 : i32, i32, i32
  }
  func.func @transform_10(%arg0: i32, %arg1: i32) -> (i32, i32, i32) {
    %c0_i32 = arith.constant 0 : i32
    %c0_i32_0 = arith.constant 0 : i32
    %c0_i32_1 = arith.constant 0 : i32
    return %arg1, %c0_i32, %c0_i32_0 : i32, i32, i32
  }
  func.func @transform_11(%arg0: i32, %arg1: i32) -> (i32, i32, i32) {
    %c0_i32 = arith.constant 0 : i32
    %c0_i32_0 = arith.constant 0 : i32
    %c0_i32_1 = arith.constant 0 : i32
    return %arg1, %c0_i32, %c0_i32_0 : i32, i32, i32
  }
  func.func @transform_12(%arg0: i32, %arg1: i32) -> (i32, i32, i32) {
    %c0_i32 = arith.constant 0 : i32
    %c0_i32_0 = arith.constant 0 : i32
    %c0_i32_1 = arith.constant 0 : i32
    return %arg1, %c0_i32, %c0_i32_0 : i32, i32, i32
  }
  func.func @transform_13(%arg0: i32, %arg1: i32) -> (i32, i32, i32) {
    %c0_i32 = arith.constant 0 : i32
    %c0_i32_0 = arith.constant 0 : i32
    %c0_i32_1 = arith.constant 0 : i32
    return %arg1, %c0_i32, %c0_i32_0 : i32, i32, i32
  }
  func.func @transform_14(%arg0: i32, %arg1: i32) -> (i32, i32) {
    %c0_i32 = arith.constant 0 : i32
    %c0_i32_0 = arith.constant 0 : i32
    return %arg0, %c0_i32 : i32, i32
  }
}

</mosaic_0001>

<llo_original>
// kernel: roberta_encoder_forward.1
$region0: #{roberta_encoder_forward.1}
  #allocation0 [shape = 'u32[]', space=smem, size = 0x4, offset = 0x4, fixed_abs, tag = 'smem constant byte address 0x4 - core index']
  #allocation1 [shape = 'u32[72,128]{1,0:T(1,128)}', space=vmem, size = 0x9000, scoped, tag = 'internal scratch']
  #allocation2 [shape = 'f32[2,1,8]{2,1,0:T(1,128)}', space=vmem, size = 0x400, scoped, tag = 'scratch operand']
  %s0 = inlined_call_operand.vmem [shape: f32[16,32], index: 0, kind: input, shape index: {}]
  %s1 = inlined_call_operand.vmem [shape: s32[2,1], index: 1, kind: input, shape index: {}]
  %s2 = inlined_call_operand.vmem [shape: bf16[2,32,96], index: 2, kind: input, shape index: {}]
  %s3 = inlined_call_operand.vmem [shape: f32[2,1,96], index: 3, kind: input, shape index: {}]
  %s4 = inlined_call_operand.vmem [shape: bf16[2,32,32], index: 4, kind: input, shape index: {}]
  %s5 = inlined_call_operand.vmem [shape: f32[2,1,32], index: 5, kind: input, shape index: {}]
  %s6 = inlined_call_operand.vmem [shape: f32[2,1,32], index: 6, kind: input, shape index: {}]
  %s7 = inlined_call_operand.vmem [shape: f32[2,1,32], index: 7, kind: input, shape index: {}]
  %s8 = inlined_call_operand.vmem [shape: bf16[2,32,64], index: 8, kind: input, shape index: {}]
  %s9 = inlined_call_operand.vmem [shape: f32[2,1,64], index: 9, kind: input, shape index: {}]
  %s10 = inlined_call_operand.vmem [shape: bf16[2,64,32], index: 10, kind: input, shape index: {}]
  %s11 = inlined_call_operand.vmem [shape: f32[2,1,32], index: 11, kind: input, shape index: {}]
  %s12 = inlined_call_operand.vmem [shape: f32[2,1,32], index: 12, kind: input, shape index: {}]
  %s13 = inlined_call_operand.vmem [shape: f32[2,1,32], index: 13, kind: input, shape index: {}]
  %s14 = inlined_call_operand.hbm [shape: f32[16,32], index: 14, kind: output, shape index: {}]
  %s15 = sld [smem:[#allocation0]]
  $region93: #{roberta_encoder_forward.1} parent=0
    _
  %s17 = ssub.s32 1, %s15
  %s18 = scalar_select 0, %s17, %s15
  $region1: #{roberta_encoder_forward.1} parent=0
    #allocation3 [shape = 'u8[8192]{0}', space=vmem, size = 0x2000, scoped, tag = 'output window, operand 0, single buffered']
    #allocation4 [shape = 's32[2]{0}', space=sflag, size = 0x8, scoped, tag = 'scoped memory for roberta_encoder_forward.1']
    %19 = vsyncpa [#allocation4], 0
    loop: start=0, step=1, limit=4
    $region2: #{roberta_encoder_forward.1} parent=1 // loop_pre_header
      _
    $region3: #{roberta_encoder_forward.1} parent=1 // loop_header
      %s21 = sphi 0, %s25
      %p22 = scmp.ge.s32.totalorder %s21, 4
      %s28 = sphi 0, %s40
      %s29 = sphi 0, %s36
      %s30 = sphi 0, %s28
      %s31 = sphi 0, %s29
      %s32 = sphi 0, %s30
      %s33 = sphi 0, %s31
      %s43 = sphi 0, %s45
      %s46 = sphi 0, %s43
      %s47 = sphi 0, %s46
      %s63 = sphi 0, %s47
      %s69 = sphi 0, %s71
      %s72 = sphi 0, %s69
      %s73 = sphi 0, %s72
      %s89 = sphi 0, %s73
      %s95 = sphi 0, %s97
      %s98 = sphi 0, %s95
      %s99 = sphi 0, %s98
      %s115 = sphi 0, %s99
      %s121 = sphi 0, %s123
      %s124 = sphi 0, %s121
      %s125 = sphi 0, %s124
      %s141 = sphi 0, %s125
      %s147 = sphi 0, %s149
      %s150 = sphi 0, %s147
      %s151 = sphi 0, %s150
      %s167 = sphi 0, %s151
      %s173 = sphi 0, %s175
      %s176 = sphi 0, %s173
      %s177 = sphi 0, %s176
      %s193 = sphi 0, %s177
      %s199 = sphi 0, %s201
      %s202 = sphi 0, %s199
      %s203 = sphi 0, %s202
      %s219 = sphi 0, %s203
      %s225 = sphi 0, %s227
      %s228 = sphi 0, %s225
      %s229 = sphi 0, %s228
      %s245 = sphi 0, %s229
      %s251 = sphi 0, %s253
      %s254 = sphi 0, %s251
      %s255 = sphi 0, %s254
      %s271 = sphi 0, %s255
      %s277 = sphi 0, %s279
      %s280 = sphi 0, %s277
      %s281 = sphi 0, %s280
      %s297 = sphi 0, %s281
      %s303 = sphi 0, %s305
      %s306 = sphi 0, %s303
      %s307 = sphi 0, %s306
      %s323 = sphi 0, %s307
      %s329 = sphi 0, %s331
      %s332 = sphi 0, %s329
      %s333 = sphi 0, %s332
      %s349 = sphi 0, %s333
      %s355 = sphi 0, %s357
      %s358 = sphi 0, %s355
      %s359 = sphi 0, %s358
      %s375 = sphi 0, %s359
      %s381 = sphi 0, %s383
      %s384 = sphi 0, %s381
      %s385 = sphi 0, %s384
      %s401 = sphi 0, %s385
      %s407 = sphi 0, %s409
      %s410 = sphi 0, %s407
      %s411 = sphi 0, %s410
      %s427 = sphi 0, %s411
    $region4: #{roberta_encoder_forward.1} parent=1 // loop_header_branch
      %24 = sbr.rel (%p22) target = $region8
    $region5: #{roberta_encoder_forward.1} parent=1 // loop_body
      %s26 = ssub.s32 %s21, 1
      %s27 = ssub.s32 %s21, 2
      %s34 = sadd.s32 1, %s29
      %p35 = scmp.ge.s32.totalorder %s34, 2
      %s36 = scalar_select %p35, 0, %s34
      %s37 = sadd.s32 1, %s28
      %s38 = scalar_select %p35, %s37, %s28
      %p39 = scmp.ge.s32.totalorder %s38, 1
      %s40 = scalar_select %p39, 0, %s38
      %s41 = ssub.s32 %s28, %s40
      %p42 = scmp.eq.s32.totalorder %s41, 0
      %s44 = sadd.s32 %s43, 1
      %s45 = scalar_select %p42, %s43, %s44
      %p48 = pneg %p42
      %p49 = scmp.eq.s32.totalorder %s21, 1
      %p50 = por %p48, %p49
      %p51 = scmp.ne.s32.totalorder %s43, %s46
      %p52 = scmp.eq.s32.totalorder %s21, 0
      %p53 = por %p51, %p52
      %p54 = scmp.ne.s32.totalorder %s43, %s46
      %p55 = scmp.eq.s32.totalorder %s26, 1
      %p56 = por %p54, %p55
      %p57 = scmp.ne.s32.totalorder %s46, %s47
      %p58 = scmp.eq.s32.totalorder %s26, 0
      %p59 = por %p57, %p58
      %p60 = scmp.ne.s32.totalorder %s46, %s47
      %p61 = scmp.eq.s32.totalorder %s27, 1
      %p62 = por %p60, %p61
      %p64 = scmp.ne.s32.totalorder %s47, %s63
      %p65 = scmp.eq.s32.totalorder %s27, 0
      %p66 = por %p64, %p65
      %s67 = ssub.s32 %s28, %s40
      %p68 = scmp.eq.s32.totalorder %s67, 0
      %s70 = sadd.s32 %s69, 1
      %s71 = scalar_select %p68, %s69, %s70
      %p74 = pneg %p68
      %p75 = scmp.eq.s32.totalorder %s21, 1
      %p76 = por %p74, %p75
      %p77 = scmp.ne.s32.totalorder %s69, %s72
      %p78 = scmp.eq.s32.totalorder %s21, 0
      %p79 = por %p77, %p78
      %p80 = scmp.ne.s32.totalorder %s69, %s72
      %p81 = scmp.eq.s32.totalorder %s26, 1
      %p82 = por %p80, %p81
      %p83 = scmp.ne.s32.totalorder %s72, %s73
      %p84 = scmp.eq.s32.totalorder %s26, 0
      %p85 = por %p83, %p84
      %p86 = scmp.ne.s32.totalorder %s72, %s73
      %p87 = scmp.eq.s32.totalorder %s27, 1
      %p88 = por %p86, %p87
      %p90 = scmp.ne.s32.totalorder %s73, %s89
      %p91 = scmp.eq.s32.totalorder %s27, 0
      %p92 = por %p90, %p91
      %s93 = ssub.s32 %s29, %s36
      %p94 = scmp.eq.s32.totalorder %s93, 0
      %s96 = sadd.s32 %s95, 1
      %s97 = scalar_select %p94, %s95, %s96
      %p100 = pneg %p94
      %p101 = scmp.eq.s32.totalorder %s21, 1
      %p102 = por %p100, %p101
      %p103 = scmp.ne.s32.totalorder %s95, %s98
      %p104 = scmp.eq.s32.totalorder %s21, 0
      %p105 = por %p103, %p104
      %p106 = scmp.ne.s32.totalorder %s95, %s98
      %p107 = scmp.eq.s32.totalorder %s26, 1
      %p108 = por %p106, %p107
      %p109 = scmp.ne.s32.totalorder %s98, %s99
      %p110 = scmp.eq.s32.totalorder %s26, 0
      %p111 = por %p109, %p110
      %p112 = scmp.ne.s32.totalorder %s98, %s99
      %p113 = scmp.eq.s32.totalorder %s27, 1
      %p114 = por %p112, %p113
      %p116 = scmp.ne.s32.totalorder %s99, %s115
      %p117 = scmp.eq.s32.totalorder %s27, 0
      %p118 = por %p116, %p117
      %s119 = ssub.s32 %s29, %s36
      %p120 = scmp.eq.s32.totalorder %s119, 0
      %s122 = sadd.s32 %s121, 1
      %s123 = scalar_select %p120, %s121, %s122
      %p126 = pneg %p120
      %p127 = scmp.eq.s32.totalorder %s21, 1
      %p128 = por %p126, %p127
      %p129 = scmp.ne.s32.totalorder %s121, %s124
      %p130 = scmp.eq.s32.totalorder %s21, 0
      %p131 = por %p129, %p130
      %p132 = scmp.ne.s32.totalorder %s121, %s124
      %p133 = scmp.eq.s32.totalorder %s26, 1
      %p134 = por %p132, %p133
      %p135 = scmp.ne.s32.totalorder %s124, %s125
      %p136 = scmp.eq.s32.totalorder %s26, 0
      %p137 = por %p135, %p136
      %p138 = scmp.ne.s32.totalorder %s124, %s125
      %p139 = scmp.eq.s32.totalorder %s27, 1
      %p140 = por %p138, %p139
      %p142 = scmp.ne.s32.totalorder %s125, %s141
      %p143 = scmp.eq.s32.totalorder %s27, 0
      %p144 = por %p142, %p143
      %s145 = ssub.s32 %s29, %s36
      %p146 = scmp.eq.s32.totalorder %s145, 0
      %s148 = sadd.s32 %s147, 1
      %s149 = scalar_select %p146, %s147, %s148
      %p152 = pneg %p146
      %p153 = scmp.eq.s32.totalorder %s21, 1
      %p154 = por %p152, %p153
      %p155 = scmp.ne.s32.totalorder %s147, %s150
      %p156 = scmp.eq.s32.totalorder %s21, 0
      %p157 = por %p155, %p156
      %p158 = scmp.ne.s32.totalorder %s147, %s150
      %p159 = scmp.eq.s32.totalorder %s26, 1
      %p160 = por %p158, %p159
      %p161 = scmp.ne.s32.totalorder %s150, %s151
      %p162 = scmp.eq.s32.totalorder %s26, 0
      %p163 = por %p161, %p162
      %p164 = scmp.ne.s32.totalorder %s150, %s151
      %p165 = scmp.eq.s32.totalorder %s27, 1
      %p166 = por %p164, %p165
      %p168 = scmp.ne.s32.totalorder %s151, %s167
      %p169 = scmp.eq.s32.totalorder %s27, 0
      %p170 = por %p168, %p169
      %s171 = ssub.s32 %s29, %s36
      %p172 = scmp.eq.s32.totalorder %s171, 0
      %s174 = sadd.s32 %s173, 1
      %s175 = scalar_select %p172, %s173, %s174
      %p178 = pneg %p172
      %p179 = scmp.eq.s32.totalorder %s21, 1
      %p180 = por %p178, %p179
      %p181 = scmp.ne.s32.totalorder %s173, %s176
      %p182 = scmp.eq.s32.totalorder %s21, 0
      %p183 = por %p181, %p182
      %p184 = scmp.ne.s32.totalorder %s173, %s176
      %p185 = scmp.eq.s32.totalorder %s26, 1
      %p186 = por %p184, %p185
      %p187 = scmp.ne.s32.totalorder %s176, %s177
      %p188 = scmp.eq.s32.totalorder %s26, 0
      %p189 = por %p187, %p188
      %p190 = scmp.ne.s32.totalorder %s176, %s177
      %p191 = scmp.eq.s32.totalorder %s27, 1
      %p192 = por %p190, %p191
      %p194 = scmp.ne.s32.totalorder %s177, %s193
      %p195 = scmp.eq.s32.totalorder %s27, 0
      %p196 = por %p194, %p195
      %s197 = ssub.s32 %s29, %s36
      %p198 = scmp.eq.s32.totalorder %s197, 0
      %s200 = sadd.s32 %s199, 1
      %s201 = scalar_select %p198, %s199, %s200
      %p204 = pneg %p198
      %p205 = scmp.eq.s32.totalorder %s21, 1
      %p206 = por %p204, %p205
      %p207 = scmp.ne.s32.totalorder %s199, %s202
      %p208 = scmp.eq.s32.totalorder %s21, 0
      %p209 = por %p207, %p208
      %p210 = scmp.ne.s32.totalorder %s199, %s202
      %p211 = scmp.eq.s32.totalorder %s26, 1
      %p212 = por %p210, %p211
      %p213 = scmp.ne.s32.totalorder %s202, %s203
      %p214 = scmp.eq.s32.totalorder %s26, 0
      %p215 = por %p213, %p214
      %p216 = scmp.ne.s32.totalorder %s202, %s203
      %p217 = scmp.eq.s32.totalorder %s27, 1
      %p218 = por %p216, %p217
      %p220 = scmp.ne.s32.totalorder %s203, %s219
      %p221 = scmp.eq.s32.totalorder %s27, 0
      %p222 = por %p220, %p221
      %s223 = ssub.s32 %s29, %s36
      %p224 = scmp.eq.s32.totalorder %s223, 0
      %s226 = sadd.s32 %s225, 1
      %s227 = scalar_select %p224, %s225, %s226
      %p230 = pneg %p224
      %p231 = scmp.eq.s32.totalorder %s21, 1
      %p232 = por %p230, %p231
      %p233 = scmp.ne.s32.totalorder %s225, %s228
      %p234 = scmp.eq.s32.totalorder %s21, 0
      %p235 = por %p233, %p234
      %p236 = scmp.ne.s32.totalorder %s225, %s228
      %p237 = scmp.eq.s32.totalorder %s26, 1
      %p238 = por %p236, %p237
      %p239 = scmp.ne.s32.totalorder %s228, %s229
      %p240 = scmp.eq.s32.totalorder %s26, 0
      %p241 = por %p239, %p240
      %p242 = scmp.ne.s32.totalorder %s228, %s229
      %p243 = scmp.eq.s32.totalorder %s27, 1
      %p244 = por %p242, %p243
      %p246 = scmp.ne.s32.totalorder %s229, %s245
      %p247 = scmp.eq.s32.totalorder %s27, 0
      %p248 = por %p246, %p247
      %s249 = ssub.s32 %s29, %s36
      %p250 = scmp.eq.s32.totalorder %s249, 0
      %s252 = sadd.s32 %s251, 1
      %s253 = scalar_select %p250, %s251, %s252
      %p256 = pneg %p250
      %p257 = scmp.eq.s32.totalorder %s21, 1
      %p258 = por %p256, %p257
      %p259 = scmp.ne.s32.totalorder %s251, %s254
      %p260 = scmp.eq.s32.totalorder %s21, 0
      %p261 = por %p259, %p260
      %p262 = scmp.ne.s32.totalorder %s251, %s254
      %p263 = scmp.eq.s32.totalorder %s26, 1
      %p264 = por %p262, %p263
      %p265 = scmp.ne.s32.totalorder %s254, %s255
      %p266 = scmp.eq.s32.totalorder %s26, 0
      %p267 = por %p265, %p266
      %p268 = scmp.ne.s32.totalorder %s254, %s255
      %p269 = scmp.eq.s32.totalorder %s27, 1
      %p270 = por %p268, %p269
      %p272 = scmp.ne.s32.totalorder %s255, %s271
      %p273 = scmp.eq.s32.totalorder %s27, 0
      %p274 = por %p272, %p273
      %s275 = ssub.s32 %s29, %s36
      %p276 = scmp.eq.s32.totalorder %s275, 0
      %s278 = sadd.s32 %s277, 1
      %s279 = scalar_select %p276, %s277, %s278
      %p282 = pneg %p276
      %p283 = scmp.eq.s32.totalorder %s21, 1
      %p284 = por %p282, %p283
      %p285 = scmp.ne.s32.totalorder %s277, %s280
      %p286 = scmp.eq.s32.totalorder %s21, 0
      %p287 = por %p285, %p286
      %p288 = scmp.ne.s32.totalorder %s277, %s280
      %p289 = scmp.eq.s32.totalorder %s26, 1
      %p290 = por %p288, %p289
      %p291 = scmp.ne.s32.totalorder %s280, %s281
      %p292 = scmp.eq.s32.totalorder %s26, 0
      %p293 = por %p291, %p292
      %p294 = scmp.ne.s32.totalorder %s280, %s281
      %p295 = scmp.eq.s32.totalorder %s27, 1
      %p296 = por %p294, %p295
      %p298 = scmp.ne.s32.totalorder %s281, %s297
      %p299 = scmp.eq.s32.totalorder %s27, 0
      %p300 = por %p298, %p299
      %s301 = ssub.s32 %s29, %s36
      %p302 = scmp.eq.s32.totalorder %s301, 0
      %s304 = sadd.s32 %s303, 1
      %s305 = scalar_select %p302, %s303, %s304
      %p308 = pneg %p302
      %p309 = scmp.eq.s32.totalorder %s21, 1
      %p310 = por %p308, %p309
      %p311 = scmp.ne.s32.totalorder %s303, %s306
      %p312 = scmp.eq.s32.totalorder %s21, 0
      %p313 = por %p311, %p312
      %p314 = scmp.ne.s32.totalorder %s303, %s306
      %p315 = scmp.eq.s32.totalorder %s26, 1
      %p316 = por %p314, %p315
      %p317 = scmp.ne.s32.totalorder %s306, %s307
      %p318 = scmp.eq.s32.totalorder %s26, 0
      %p319 = por %p317, %p318
      %p320 = scmp.ne.s32.totalorder %s306, %s307
      %p321 = scmp.eq.s32.totalorder %s27, 1
      %p322 = por %p320, %p321
      %p324 = scmp.ne.s32.totalorder %s307, %s323
      %p325 = scmp.eq.s32.totalorder %s27, 0
      %p326 = por %p324, %p325
      %s327 = ssub.s32 %s29, %s36
      %p328 = scmp.eq.s32.totalorder %s327, 0
      %s330 = sadd.s32 %s329, 1
      %s331 = scalar_select %p328, %s329, %s330
      %p334 = pneg %p328
      %p335 = scmp.eq.s32.totalorder %s21, 1
      %p336 = por %p334, %p335
      %p337 = scmp.ne.s32.totalorder %s329, %s332
      %p338 = scmp.eq.s32.totalorder %s21, 0
      %p339 = por %p337, %p338
      %p340 = scmp.ne.s32.totalorder %s329, %s332
      %p341 = scmp.eq.s32.totalorder %s26, 1
      %p342 = por %p340, %p341
      %p343 = scmp.ne.s32.totalorder %s332, %s333
      %p344 = scmp.eq.s32.totalorder %s26, 0
      %p345 = por %p343, %p344
      %p346 = scmp.ne.s32.totalorder %s332, %s333
      %p347 = scmp.eq.s32.totalorder %s27, 1
      %p348 = por %p346, %p347
      %p350 = scmp.ne.s32.totalorder %s333, %s349
      %p351 = scmp.eq.s32.totalorder %s27, 0
      %p352 = por %p350, %p351
      %s353 = ssub.s32 %s29, %s36
      %p354 = scmp.eq.s32.totalorder %s353, 0
      %s356 = sadd.s32 %s355, 1
      %s357 = scalar_select %p354, %s355, %s356
      %p360 = pneg %p354
      %p361 = scmp.eq.s32.totalorder %s21, 1
      %p362 = por %p360, %p361
      %p363 = scmp.ne.s32.totalorder %s355, %s358
      %p364 = scmp.eq.s32.totalorder %s21, 0
      %p365 = por %p363, %p364
      %p366 = scmp.ne.s32.totalorder %s355, %s358
      %p367 = scmp.eq.s32.totalorder %s26, 1
      %p368 = por %p366, %p367
      %p369 = scmp.ne.s32.totalorder %s358, %s359
      %p370 = scmp.eq.s32.totalorder %s26, 0
      %p371 = por %p369, %p370
      %p372 = scmp.ne.s32.totalorder %s358, %s359
      %p373 = scmp.eq.s32.totalorder %s27, 1
      %p374 = por %p372, %p373
      %p376 = scmp.ne.s32.totalorder %s359, %s375
      %p377 = scmp.eq.s32.totalorder %s27, 0
      %p378 = por %p376, %p377
      %s379 = ssub.s32 %s29, %s36
      %p380 = scmp.eq.s32.totalorder %s379, 0
      %s382 = sadd.s32 %s381, 1
      %s383 = scalar_select %p380, %s381, %s382
      %p386 = pneg %p380
      %p387 = scmp.eq.s32.totalorder %s21, 1
      %p388 = por %p386, %p387
      %p389 = scmp.ne.s32.totalorder %s381, %s384
      %p390 = scmp.eq.s32.totalorder %s21, 0
      %p391 = por %p389, %p390
      %p392 = scmp.ne.s32.totalorder %s381, %s384
      %p393 = scmp.eq.s32.totalorder %s26, 1
      %p394 = por %p392, %p393
      %p395 = scmp.ne.s32.totalorder %s384, %s385
      %p396 = scmp.eq.s32.totalorder %s26, 0
      %p397 = por %p395, %p396
      %p398 = scmp.ne.s32.totalorder %s384, %s385
      %p399 = scmp.eq.s32.totalorder %s27, 1
      %p400 = por %p398, %p399
      %p402 = scmp.ne.s32.totalorder %s385, %s401
      %p403 = scmp.eq.s32.totalorder %s27, 0
      %p404 = por %p402, %p403
      %s405 = ssub.s32 %s28, %s40
      %p406 = scmp.eq.s32.totalorder %s405, 0
      %s408 = sadd.s32 %s407, 1
      %s409 = scalar_select %p406, %s407, %s408
      %p412 = pneg %p406
      %p413 = scmp.eq.s32.totalorder %s21, 1
      %p414 = por %p412, %p413
      %p415 = scmp.ne.s32.totalorder %s407, %s410
      %p416 = scmp.eq.s32.totalorder %s21, 0
      %p417 = por %p415, %p416
      %p418 = scmp.ne.s32.totalorder %s407, %s410
      %p419 = scmp.eq.s32.totalorder %s26, 1
      %p420 = por %p418, %p419
      %p421 = scmp.ne.s32.totalorder %s410, %s411
      %p422 = scmp.eq.s32.totalorder %s26, 0
      %p423 = por %p421, %p422
      %p424 = scmp.ne.s32.totalorder %s410, %s411
      %p425 = scmp.eq.s32.totalorder %s27, 1
      %p426 = por %p424, %p425
      %p428 = scmp.ne.s32.totalorder %s411, %s427
      %p429 = scmp.eq.s32.totalorder %s27, 0
      %p430 = por %p428, %p429
      %p431 = scmp.le.s32.totalorder 1, %s21
      %p432 = scmp.lt.s32.totalorder %s21, 3
      %p433 = pnand %p431, %p432
      %p434 = pneg %p433
      // Predicated region
      $region9: #{roberta_encoder_forward.1} parent=5 // pred_check
        _
      $region10: #{roberta_encoder_forward.1} parent=5 // pred_check_branch
        %436 = sbr.rel (%p433) target = $region12
      $region11: #{roberta_encoder_forward.1} parent=5 // pred_region
        %s437 = ssub.s32 %s21, 1
        // Predicated region
        $region13: #{roberta_encoder_forward.1} parent=11 // pred_check
          %p438 = pneg %p59
        $region14: #{roberta_encoder_forward.1} parent=11 // pred_check_branch
          %440 = sbr.rel (%p438) target = $region16
        $region15: #{roberta_encoder_forward.1} parent=11 // pred_region
          %s441 = smul.u32 2, %s30
          %p442 = scmp.lt.s32.totalorder %s441, 1
          %s443 = scalar_select %p442, %s441, 1
          %s444 = smul.addr %s443, 8
          %s445 = scalar_lea.vmem %s0, %s444
          %s446 = smul.u32 2, %s30
        $region16: #{roberta_encoder_forward.1} parent=11 // pred_fallthru
          _
        // Predicated region
        $region17: #{roberta_encoder_forward.1} parent=11 // pred_check
          %p447 = pneg %p85
        $region18: #{roberta_encoder_forward.1} parent=11 // pred_check_branch
          %449 = sbr.rel (%p447) target = $region20
        $region19: #{roberta_encoder_forward.1} parent=11 // pred_region
          %p450 = scmp.lt.s32.totalorder %s30, 0
          %s451 = scalar_select %p450, %s30, 0
          %s452 = smul.addr %s451, 2
          %s453 = scalar_lea.vmem %s1, %s452
        $region20: #{roberta_encoder_forward.1} parent=11 // pred_fallthru
          _
      $region12: #{roberta_encoder_forward.1} parent=5 // pred_fallthru
        _
      %p454 = scmp.lt.s32.totalorder %s21, 2
      // Predicated region
      $region21: #{roberta_encoder_forward.1} parent=5 // pred_check
        %p455 = pneg %p454
      $region22: #{roberta_encoder_forward.1} parent=5 // pred_check_branch
        %457 = sbr.rel (%p455) target = $region24
      $region23: #{roberta_encoder_forward.1} parent=5 // pred_region
        // Predicated region
        $region25: #{roberta_encoder_forward.1} parent=23 // pred_check
          %p458 = pneg %p105
        $region26: #{roberta_encoder_forward.1} parent=23 // pred_check_branch
          %460 = sbr.rel (%p458) target = $region28
        $region27: #{roberta_encoder_forward.1} parent=23 // pred_region
          %p461 = scmp.lt.s32.totalorder %s29, 1
          %s462 = scalar_select %p461, %s29, 1
          %s463 = smul.addr %s462, 4
          %s464 = smul.addr %s463, 4
          %s465 = scalar_lea.vmem %s2, %s464
        $region28: #{roberta_encoder_forward.1} parent=23 // pred_fallthru
          _
        // Predicated region
        $region29: #{roberta_encoder_forward.1} parent=23 // pred_check
          %p466 = pneg %p131
        $region30: #{roberta_encoder_forward.1} parent=23 // pred_check_branch
          %468 = sbr.rel (%p466) target = $region32
        $region31: #{roberta_encoder_forward.1} parent=23 // pred_region
          %p469 = scmp.lt.s32.totalorder %s29, 1
          %s470 = scalar_select %p469, %s29, 1
          %s471 = scalar_lea.vmem %s3, %s470
        $region32: #{roberta_encoder_forward.1} parent=23 // pred_fallthru
          _
        // Predicated region
        $region33: #{roberta_encoder_forward.1} parent=23 // pred_check
          %p472 = pneg %p157
        $region34: #{roberta_encoder_forward.1} parent=23 // pred_check_branch
          %474 = sbr.rel (%p472) target = $region36
        $region35: #{roberta_encoder_forward.1} parent=23 // pred_region
          %p475 = scmp.lt.s32.totalorder %s29, 1
          %s476 = scalar_select %p475, %s29, 1
          %s477 = smul.addr %s476, 4
          %s478 = smul.addr %s477, 4
          %s479 = scalar_lea.vmem %s4, %s478
        $region36: #{roberta_encoder_forward.1} parent=23 // pred_fallthru
          _
        // Predicated region
        $region37: #{roberta_encoder_forward.1} parent=23 // pred_check
          %p480 = pneg %p183
        $region38: #{roberta_encoder_forward.1} parent=23 // pred_check_branch
          %482 = sbr.rel (%p480) target = $region40
        $region39: #{roberta_encoder_forward.1} parent=23 // pred_region
          %p483 = scmp.lt.s32.totalorder %s29, 1
          %s484 = scalar_select %p483, %s29, 1
          %s485 = scalar_lea.vmem %s5, %s484
        $region40: #{roberta_encoder_forward.1} parent=23 // pred_fallthru
          _
        // Predicated region
        $region41: #{roberta_encoder_forward.1} parent=23 // pred_check
          %p486 = pneg %p209
        $region42: #{roberta_encoder_forward.1} parent=23 // pred_check_branch
          %488 = sbr.rel (%p486) target = $region44
        $region43: #{roberta_encoder_forward.1} parent=23 // pred_region
          %p489 = scmp.lt.s32.totalorder %s29, 1
          %s490 = scalar_select %p489, %s29, 1
          %s491 = scalar_lea.vmem %s6, %s490
        $region44: #{roberta_encoder_forward.1} parent=23 // pred_fallthru
          _
        // Predicated region
        $region45: #{roberta_encoder_forward.1} parent=23 // pred_check
          %p492 = pneg %p235
        $region46: #{roberta_encoder_forward.1} parent=23 // pred_check_branch
          %494 = sbr.rel (%p492) target = $region48
        $region47: #{roberta_encoder_forward.1} parent=23 // pred_region
          %p495 = scmp.lt.s32.totalorder %s29, 1
          %s496 = scalar_select %p495, %s29, 1
          %s497 = scalar_lea.vmem %s7, %s496
        $region48: #{roberta_encoder_forward.1} parent=23 // pred_fallthru
          _
        // Predicated region
        $region49: #{roberta_encoder_forward.1} parent=23 // pred_check
          %p498 = pneg %p261
        $region50: #{roberta_encoder_forward.1} parent=23 // pred_check_branch
          %500 = sbr.rel (%p498) target = $region52
        $region51: #{roberta_encoder_forward.1} parent=23 // pred_region
          %p501 = scmp.lt.s32.totalorder %s29, 1
          %s502 = scalar_select %p501, %s29, 1
          %s503 = smul.addr %s502, 4
          %s504 = smul.addr %s503, 4
          %s505 = scalar_lea.vmem %s8, %s504
        $region52: #{roberta_encoder_forward.1} parent=23 // pred_fallthru
          _
        // Predicated region
        $region53: #{roberta_encoder_forward.1} parent=23 // pred_check
          %p506 = pneg %p287
        $region54: #{roberta_encoder_forward.1} parent=23 // pred_check_branch
          %508 = sbr.rel (%p506) target = $region56
        $region55: #{roberta_encoder_forward.1} parent=23 // pred_region
          %p509 = scmp.lt.s32.totalorder %s29, 1
          %s510 = scalar_select %p509, %s29, 1
          %s511 = scalar_lea.vmem %s9, %s510
        $region56: #{roberta_encoder_forward.1} parent=23 // pred_fallthru
          _
        // Predicated region
        $region57: #{roberta_encoder_forward.1} parent=23 // pred_check
          %p512 = pneg %p313
        $region58: #{roberta_encoder_forward.1} parent=23 // pred_check_branch
          %514 = sbr.rel (%p512) target = $region60
        $region59: #{roberta_encoder_forward.1} parent=23 // pred_region
          %p515 = scmp.lt.s32.totalorder %s29, 1
          %s516 = scalar_select %p515, %s29, 1
          %s517 = smul.addr %s516, 8
          %s518 = smul.addr %s517, 4
          %s519 = scalar_lea.vmem %s10, %s518
        $region60: #{roberta_encoder_forward.1} parent=23 // pred_fallthru
          _
        // Predicated region
        $region61: #{roberta_encoder_forward.1} parent=23 // pred_check
          %p520 = pneg %p339
        $region62: #{roberta_encoder_forward.1} parent=23 // pred_check_branch
          %522 = sbr.rel (%p520) target = $region64
        $region63: #{roberta_encoder_forward.1} parent=23 // pred_region
          %p523 = scmp.lt.s32.totalorder %s29, 1
          %s524 = scalar_select %p523, %s29, 1
          %s525 = scalar_lea.vmem %s11, %s524
        $region64: #{roberta_encoder_forward.1} parent=23 // pred_fallthru
          _
        // Predicated region
        $region65: #{roberta_encoder_forward.1} parent=23 // pred_check
          %p526 = pneg %p365
        $region66: #{roberta_encoder_forward.1} parent=23 // pred_check_branch
          %528 = sbr.rel (%p526) target = $region68
        $region67: #{roberta_encoder_forward.1} parent=23 // pred_region
          %p529 = scmp.lt.s32.totalorder %s29, 1
          %s530 = scalar_select %p529, %s29, 1
          %s531 = scalar_lea.vmem %s12, %s530
        $region68: #{roberta_encoder_forward.1} parent=23 // pred_fallthru
          _
        // Predicated region
        $region69: #{roberta_encoder_forward.1} parent=23 // pred_check
          %p532 = pneg %p391
        $region70: #{roberta_encoder_forward.1} parent=23 // pred_check_branch
          %534 = sbr.rel (%p532) target = $region72
        $region71: #{roberta_encoder_forward.1} parent=23 // pred_region
          %p535 = scmp.lt.s32.totalorder %s29, 1
          %s536 = scalar_select %p535, %s29, 1
          %s537 = scalar_lea.vmem %s13, %s536
        $region72: #{roberta_encoder_forward.1} parent=23 // pred_fallthru
          _
      $region24: #{roberta_encoder_forward.1} parent=5 // pred_fallthru
        _
      %p538 = scmp.le.s32.totalorder 1, %s21
      %p539 = scmp.lt.s32.totalorder %s21, 3
      %p540 = pnand %p538, %p539
      %p541 = pneg %p540
      // Predicated region
      $region73: #{roberta_encoder_forward.1} parent=5 // pred_check
        _
      $region74: #{roberta_encoder_forward.1} parent=5 // pred_check_branch
        %543 = sbr.rel (%p540) target = $region76
      $region75: #{roberta_encoder_forward.1} parent=5 // pred_region
        %s544 = ssub.s32 %s21, 1
        %s545 = smul.u32 2, %s30
        %p546 = scmp.lt.s32.totalorder %s545, 1
        %s547 = scalar_select %p546, %s545, 1
        %s548 = smul.addr %s547, 8
        %s549 = scalar_lea.vmem %s0, %s548
        %p550 = pneg %p59
        %p551 = pneg %p56
        %p552 = scmp.lt.s32.totalorder %s30, 0
        %s553 = scalar_select %p552, %s30, 0
        %s554 = smul.addr %s553, 2
        %s555 = scalar_lea.vmem %s1, %s554
        %p556 = pneg %p85
        %p557 = pneg %p82
        %p558 = scmp.lt.s32.totalorder %s31, 1
        %s559 = scalar_select %p558, %s31, 1
        %s560 = smul.addr %s559, 4
        %s561 = smul.addr %s560, 4
        %s562 = scalar_lea.vmem %s2, %s561
        %p563 = pneg %p111
        %p564 = pneg %p108
        %p565 = scmp.lt.s32.totalorder %s31, 1
        %s566 = scalar_select %p565, %s31, 1
        %s567 = scalar_lea.vmem %s3, %s566
        %p568 = pneg %p137
        %p569 = pneg %p134
        %p570 = scmp.lt.s32.totalorder %s31, 1
        %s571 = scalar_select %p570, %s31, 1
        %s572 = smul.addr %s571, 4
        %s573 = smul.addr %s572, 4
        %s574 = scalar_lea.vmem %s4, %s573
        %p575 = pneg %p163
        %p576 = pneg %p160
        %p577 = scmp.lt.s32.totalorder %s31, 1
        %s578 = scalar_select %p577, %s31, 1
        %s579 = scalar_lea.vmem %s5, %s578
        %p580 = pneg %p189
        %p581 = pneg %p186
        %p582 = scmp.lt.s32.totalorder %s31, 1
        %s583 = scalar_select %p582, %s31, 1
        %s584 = scalar_lea.vmem %s6, %s583
        %p585 = pneg %p215
        %p586 = pneg %p212
        %p587 = scmp.lt.s32.totalorder %s31, 1
        %s588 = scalar_select %p587, %s31, 1
        %s589 = scalar_lea.vmem %s7, %s588
        %p590 = pneg %p241
        %p591 = pneg %p238
        %p592 = scmp.lt.s32.totalorder %s31, 1
        %s593 = scalar_select %p592, %s31, 1
        %s594 = smul.addr %s593, 4
        %s595 = smul.addr %s594, 4
        %s596 = scalar_lea.vmem %s8, %s595
        %p597 = pneg %p267
        %p598 = pneg %p264
        %p599 = scmp.lt.s32.totalorder %s31, 1
        %s600 = scalar_select %p599, %s31, 1
        %s601 = scalar_lea.vmem %s9, %s600
        %p602 = pneg %p293
        %p603 = pneg %p290
        %p604 = scmp.lt.s32.totalorder %s31, 1
        %s605 = scalar_select %p604, %s31, 1
        %s606 = smul.addr %s605, 8
        %s607 = smul.addr %s606, 4
        %s608 = scalar_lea.vmem %s10, %s607
        %p609 = pneg %p319
        %p610 = pneg %p316
        %p611 = scmp.lt.s32.totalorder %s31, 1
        %s612 = scalar_select %p611, %s31, 1
        %s613 = scalar_lea.vmem %s11, %s612
        %p614 = pneg %p345
        %p615 = pneg %p342
        %p616 = scmp.lt.s32.totalorder %s31, 1
        %s617 = scalar_select %p616, %s31, 1
        %s618 = scalar_lea.vmem %s12, %s617
        %p619 = pneg %p371
        %p620 = pneg %p368
        %p621 = scmp.lt.s32.totalorder %s31, 1
        %s622 = scalar_select %p621, %s31, 1
        %s623 = scalar_lea.vmem %s13, %s622
        %p624 = pneg %p397
        %p625 = pneg %p394
        %p626 = pneg %p423
        %p627 = pneg %p420
        %s628 = smul.u32 2, %s30
        %p629 = scmp.lt.s32.totalorder %s628, 1
        %s630 = scalar_select %p629, %s628, 1
        %s631 = smul.addr %s630, 8
        %s632 = scalar_lea.vmem %s0, %s631
        %s633 = smul.u32 2, %s30
        %p634 = scmp.lt.s32.totalorder %s30, 0
        %s635 = scalar_select %p634, %s30, 0
        %s636 = smul.addr %s635, 2
        %s637 = scalar_lea.vmem %s1, %s636
        %p638 = scmp.lt.s32.totalorder %s31, 1
        %s639 = scalar_select %p638, %s31, 1
        %s640 = smul.addr %s639, 4
        %s641 = smul.addr %s640, 4
        %s642 = scalar_lea.vmem %s2, %s641
        %p643 = scmp.lt.s32.totalorder %s31, 1
        %s644 = scalar_select %p643, %s31, 1
        %s645 = scalar_lea.vmem %s3, %s644
        %p646 = scmp.lt.s32.totalorder %s31, 1
        %s647 = scalar_select %p646, %s31, 1
        %s648 = smul.addr %s647, 4
        %s649 = smul.addr %s648, 4
        %s650 = scalar_lea.vmem %s4, %s649
        %p651 = scmp.lt.s32.totalorder %s31, 1
        %s652 = scalar_select %p651, %s31, 1
        %s653 = scalar_lea.vmem %s5, %s652
        %p654 = scmp.lt.s32.totalorder %s31, 1
        %s655 = scalar_select %p654, %s31, 1
        %s656 = scalar_lea.vmem %s6, %s655
        %p657 = scmp.lt.s32.totalorder %s31, 1
        %s658 = scalar_select %p657, %s31, 1
        %s659 = scalar_lea.vmem %s7, %s658
        %p660 = scmp.lt.s32.totalorder %s31, 1
        %s661 = scalar_select %p660, %s31, 1
        %s662 = smul.addr %s661, 4
        %s663 = smul.addr %s662, 4
        %s664 = scalar_lea.vmem %s8, %s663
        %p665 = scmp.lt.s32.totalorder %s31, 1
        %s666 = scalar_select %p665, %s31, 1
        %s667 = scalar_lea.vmem %s9, %s666
        %p668 = scmp.lt.s32.totalorder %s31, 1
        %s669 = scalar_select %p668, %s31, 1
        %s670 = smul.addr %s669, 8
        %s671 = smul.addr %s670, 4
        %s672 = scalar_lea.vmem %s10, %s671
        %p673 = scmp.lt.s32.totalorder %s31, 1
        %s674 = scalar_select %p673, %s31, 1
        %s675 = scalar_lea.vmem %s11, %s674
        %p676 = scmp.lt.s32.totalorder %s31, 1
        %s677 = scalar_select %p676, %s31, 1
        %s678 = scalar_lea.vmem %s12, %s677
        %p679 = scmp.lt.s32.totalorder %s31, 1
        %s680 = scalar_select %p679, %s31, 1
        %s681 = scalar_lea.vmem %s13, %s680
        %s682 = smul.u32 2, %s30
        %p684 = scmp.eq.s32.totalorder %s31, 0
        // Predicated region
        $region77: #{roberta_encoder_forward.1} parent=75 // pred_check
          %p685 = pneg %p684
        $region78: #{roberta_encoder_forward.1} parent=75 // pred_check_branch
          %687 = sbr.rel (%p685) target = $region80
        $region79: #{roberta_encoder_forward.1} parent=75 // pred_region
          %v688 = vld [vmem:[%s632] sm:$0xff]
          %v689 = vld [vmem:[%s632 + $0x8] sm:$0xff]
          %vm690 = vcmask 261120
          %691 = vst.msk [vmem:[#allocation3] sm:$0xff] %vm690, %v688
          %692 = vst.msk [vmem:[#allocation3 + $0x8] sm:$0xff] %vm690, %v689
          %v693 = vlaneseq
          %v694 = vand.u32 %v693, 127
          %v695 = vld [vmem:[%s637] sm:$0x3]
          %v696 = vrot.slane %v695, 1
          %697 = vset.pattern.permute.xlu0 0
          %698 = vperm.xlu0 %697, %v695
          %v699 = vpop.permute.xlu0 %698
          %v700 = vperm.slane %v699, 0
          %701 = vset.pattern.permute.xlu0 0
          %702 = vperm.xlu0 %701, %v696
          %v703 = vpop.permute.xlu0 %702
          %v704 = vperm.slane %v703, 0
          %vm705 = vcmp.lt.s32.totalorder %v694, %v700
          %vm706 = vcmp.lt.s32.totalorder %v694, %v704
          %v707 = vsel %vm705, 1.0, 0.0
          %v708 = vsel %vm706, 1.0, 0.0
          %vm709 = vcmask 57344
          %710 = vst.msk [vmem:[#allocation2] sm:$0x1] %vm709, %v707
          %711 = vst.msk [vmem:[#allocation2 + $0x1] sm:$0x1] %vm709, %v708
        $region80: #{roberta_encoder_forward.1} parent=75 // pred_fallthru
          _
        %v712 = vld [vmem:[#allocation3] sm:$0xff]
        %v713 = vld [vmem:[#allocation3 + $0x8] sm:$0xff]
        %v714 = vpack.c.bf16 %v713, %v712
        %v715 = vld [vmem:[%s642] sm:$0xf]
        %v716 = vld [vmem:[%s642 + $0x4] sm:$0xf]
        %v717 = vld [vmem:[%s642 + $0x8] sm:$0xf]
        %v718 = vld [vmem:[%s642 + $0xc] sm:$0xf]
        %v719 = vld [vmem:[%s645] sm:$0x1]
        %v721 = vperm.slane %v719, 0
        %v727 = vunpack.c.l.b16 %v715
        %v728 = vunpack.c.l.b16 %v716
        %v729 = vunpack.c.l.b16 %v717
        %v730 = vunpack.c.l.b16 %v718
        %v731 = vpack.c.b16 %v728, %v727
        %v732 = vpack.c.b16 %v730, %v729
        %vm735 = vcmask 261120
        %v737 = vsel %vm735, %v714, 0
        %739 = vmatpush.bf16.msra.mxu0 0
        %740 = vmatpush.bf16.msra.mxu0 0
        %741 = vmatpush.bf16.msra.mxu0 0
        %742 = vmatpush.bf16.msra.mxu0 0
        %743 = vmatpush.bf16.msra.mxu0 0
        %744 = vmatpush.bf16.msra.mxu0 0
        %745 = vmatpush.bf16.msra.mxu0 %v732
        %746 = vmatpush.bf16.msra.mxu0 %v731
        %747 = vmatmul.bf16.gmra.mxu0 %v737
        %v748 = vpop.f32.mrf.mxu0
        %v749 = vadd.f32 %v721, %v748
        %v750 = vpop.f32.mrf.mxu0
        %v751 = vadd.f32 %v721, %v750
        %752 = vdwg.mxu0
        %v753 = vld [vmem:[#allocation2] sm:$0x1]
        %v754 = vld [vmem:[#allocation2 + $0x1] sm:$0x1]
        %vm755 = vcmp.gt.f32.partialorder %v753, 0.0
        %vm756 = vcmp.gt.f32.partialorder %v754, 0.0
        %v757 = vmul.f32 %v749, 0.25
        %v758 = vmul.f32 %v751, 0.25
        %v759 = vpack.c.bf16 %v757, %v757
        %v760 = vpack.c.bf16 %v758, %v758
        %v761 = vpack.c.bf16 %v749, %v749
        %v762 = vpack.c.bf16 %v751, %v751
        %v764 = vunpack.c.l.b16 %v761
        %v765 = vpack.c.b16 %v764, %v764
        %766 = vrot.lane.b32.xlu0 %v765, 96
        %v767 = vpop.permute.xlu0 %766
        %vm768 = vcmask 130048
        %v770 = vsel %vm768, %v759, 0
        %v773 = vsel %vm768, %v767, 0
        %775 = vmatpush.bf16.xpose.msra.mxu0 0
        %776 = vmatpush.bf16.xpose.msra.mxu0 0
        %777 = vmatpush.bf16.xpose.msra.mxu0 0
        %778 = vmatpush.bf16.xpose.msra.mxu0 0
        %779 = vmatpush.bf16.xpose.msra.mxu0 0
        %780 = vmatpush.bf16.xpose.msra.mxu0 0
        %781 = vmatpush.bf16.xpose.msra.mxu0 0
        %782 = vmatpush.bf16.xpose.msra.mxu0 %v773
        %783 = vmatmul.bf16.gmra.mxu0 %v770
        %v784 = vpop.f32.mrf.mxu0
        %v785 = vadd.f32 0.0, %v784
        %v786 = vpop.f32.mrf.mxu0
        %787 = vdwg.mxu0
        %v789 = vunpack.c.l.b16 %v762
        %v790 = vpack.c.b16 %v789, %v789
        %791 = vrot.lane.b32.xlu0 %v790, 96
        %v792 = vpop.permute.xlu0 %791
        %v794 = vsel %vm768, %v760, 0
        %v797 = vsel %vm768, %v792, 0
        %799 = vmatpush.bf16.xpose.msra.mxu0 0
        %800 = vmatpush.bf16.xpose.msra.mxu0 0
        %801 = vmatpush.bf16.xpose.msra.mxu0 0
        %802 = vmatpush.bf16.xpose.msra.mxu0 0
        %803 = vmatpush.bf16.xpose.msra.mxu0 0
        %804 = vmatpush.bf16.xpose.msra.mxu0 0
        %805 = vmatpush.bf16.xpose.msra.mxu0 0
        %806 = vmatpush.bf16.xpose.msra.mxu0 %v797
        %807 = vmatmul.bf16.gmra.mxu0 %v794
        %v808 = vpop.f32.mrf.mxu0
        %v809 = vadd.f32 0.0, %v808
        %v810 = vpop.f32.mrf.mxu0
        %811 = vdwg.mxu0
        %v812 = vsel %vm755, 1, 0
        %v813 = vsel %vm756, 1, 0
        %v814 = vperm.slane %v812, 0
        %v815 = vperm.slane %v813, 0
        %vm816 = vcmp.eq.s32.totalorder %v814, 1
        %vm817 = vcmp.eq.s32.totalorder %v815, 1
        %v818 = vsel %vm816, %v785, -1000000.0
        %v819 = vsel %vm817, %v809, -1000000.0
        %vm820 = vcmask 64512
        %v821 = vsel %vm820, %v818, -inf
        %822 = vmax.xlane.f32.xlu0 %v821
        %v823 = vpop.xlane.xlu0 %822
        %v824 = vsel %vm820, %v819, -inf
        %825 = vmax.xlane.f32.xlu0 %v824
        %v826 = vpop.xlane.xlu0 %825
        %v827 = vsub.f32 %v818, %v823
        %v828 = vsub.f32 %v819, %v826
        %v829 = vmul.f32 %v827, 1.442695
        %v830 = vpow.pop %v829
        %v831 = vmul.f32 %v828, 1.442695
        %v832 = vpow.pop %v831
        %v833 = vpack.c.bf16 %v830, %v830
        %v834 = vpack.c.bf16 %v832, %v832
        %835 = vrot.lane.b32.xlu0 %v765, 64
        %v836 = vpop.permute.xlu0 %835
        %v838 = vsel %vm820, %v833, 0
        %vm840 = vcmask 1043456
        %v842 = vsel %vm840, %v836, 0
        %844 = vmatpush.bf16.msra.mxu0 0
        %845 = vmatpush.bf16.msra.mxu0 0
        %846 = vmatpush.bf16.msra.mxu0 0
        %847 = vmatpush.bf16.msra.mxu0 0
        %848 = vmatpush.bf16.msra.mxu0 0
        %849 = vmatpush.bf16.msra.mxu0 0
        %850 = vmatpush.bf16.msra.mxu0 0
        %851 = vmatpush.bf16.msra.mxu0 %v842
        %852 = vmatmul.bf16.gmra.mxu0 %v838
        %v853 = vpop.f32.mrf.mxu0
        %v854 = vadd.f32 0.0, %v853
        %v855 = vpop.f32.mrf.mxu0
        %856 = vdwg.mxu0
        %857 = vrot.lane.b32.xlu0 %v790, 64
        %v858 = vpop.permute.xlu0 %857
        %v860 = vsel %vm820, %v834, 0
        %v863 = vsel %vm840, %v858, 0
        %865 = vmatpush.bf16.msra.mxu0 0
        %866 = vmatpush.bf16.msra.mxu0 0
        %867 = vmatpush.bf16.msra.mxu0 0
        %868 = vmatpush.bf16.msra.mxu0 0
        %869 = vmatpush.bf16.msra.mxu0 0
        %870 = vmatpush.bf16.msra.mxu0 0
        %871 = vmatpush.bf16.msra.mxu0 0
        %872 = vmatpush.bf16.msra.mxu0 %v863
        %873 = vmatmul.bf16.gmra.mxu0 %v860
        %v874 = vpop.f32.mrf.mxu0
        %v875 = vadd.f32 0.0, %v874
        %v876 = vpop.f32.mrf.mxu0
        %877 = vdwg.mxu0
        %v878 = vsel %vm820, %v830, 0.0
        %879 = vadd.xlane.f32.xlu0 %v878
        %v880 = vpop.xlane.xlu0 %879
        %v881 = vsel %vm820, %v832, 0.0
        %882 = vadd.xlane.f32.xlu0 %v881
        %v883 = vpop.xlane.xlu0 %882
        %v884 = vrcp.pop %v880
        %v885 = vrcp.pop %v883
        %v886 = vmul.f32 %v854, %v884
        %v887 = vmul.f32 %v875, %v885
        %v888 = vpack.c.bf16 %v887, %v886
        %v889 = vld [vmem:[%s650] sm:$0xf]
        %v890 = vld [vmem:[%s650 + $0x4] sm:$0xf]
        %v892 = vunpack.c.l.b16 %v759
        %v893 = vpack.c.b16 %v892, %v892
        %894 = vrot.lane.b32.xlu0 %v893, 112
        %v895 = vpop.permute.xlu0 %894
        %896 = vrot.lane.b32.xlu0 %v765, 80
        %v897 = vpop.permute.xlu0 %896
        %v899 = vsel %vm768, %v895, 0
        %v902 = vsel %vm768, %v897, 0
        %904 = vmatpush.bf16.xpose.msra.mxu0 0
        %905 = vmatpush.bf16.xpose.msra.mxu0 0
        %906 = vmatpush.bf16.xpose.msra.mxu0 0
        %907 = vmatpush.bf16.xpose.msra.mxu0 0
        %908 = vmatpush.bf16.xpose.msra.mxu0 0
        %909 = vmatpush.bf16.xpose.msra.mxu0 0
        %910 = vmatpush.bf16.xpose.msra.mxu0 0
        %911 = vmatpush.bf16.xpose.msra.mxu0 %v902
        %912 = vmatmul.bf16.gmra.mxu0 %v899
        %v913 = vpop.f32.mrf.mxu0
        %v914 = vadd.f32 0.0, %v913
        %v915 = vpop.f32.mrf.mxu0
        %916 = vdwg.mxu0
        %v918 = vunpack.c.l.b16 %v760
        %v919 = vpack.c.b16 %v918, %v918
        %920 = vrot.lane.b32.xlu0 %v919, 112
        %v921 = vpop.permute.xlu0 %920
        %922 = vrot.lane.b32.xlu0 %v790, 80
        %v923 = vpop.permute.xlu0 %922
        %v925 = vsel %vm768, %v921, 0
        %v928 = vsel %vm768, %v923, 0
        %930 = vmatpush.bf16.xpose.msra.mxu0 0
        %931 = vmatpush.bf16.xpose.msra.mxu0 0
        %932 = vmatpush.bf16.xpose.msra.mxu0 0
        %933 = vmatpush.bf16.xpose.msra.mxu0 0
        %934 = vmatpush.bf16.xpose.msra.mxu0 0
        %935 = vmatpush.bf16.xpose.msra.mxu0 0
        %936 = vmatpush.bf16.xpose.msra.mxu0 0
        %937 = vmatpush.bf16.xpose.msra.mxu0 %v928
        %938 = vmatmul.bf16.gmra.mxu0 %v925
        %v939 = vpop.f32.mrf.mxu0
        %v940 = vadd.f32 0.0, %v939
        %v941 = vpop.f32.mrf.mxu0
        %942 = vdwg.mxu0
        %v943 = vsel %vm816, %v914, -1000000.0
        %v944 = vsel %vm817, %v940, -1000000.0
        %v945 = vsel %vm820, %v943, -inf
        %946 = vmax.xlane.f32.xlu0 %v945
        %v947 = vpop.xlane.xlu0 %946
        %v948 = vsel %vm820, %v944, -inf
        %949 = vmax.xlane.f32.xlu0 %v948
        %v950 = vpop.xlane.xlu0 %949
        %v951 = vsub.f32 %v943, %v947
        %v952 = vsub.f32 %v944, %v950
        %v953 = vmul.f32 %v951, 1.442695
        %v954 = vpow.pop %v953
        %v955 = vmul.f32 %v952, 1.442695
        %v956 = vpow.pop %v955
        %v957 = vpack.c.bf16 %v954, %v954
        %v958 = vpack.c.bf16 %v956, %v956
        %959 = vrot.lane.b32.xlu0 %v765, 48
        %v960 = vpop.permute.xlu0 %959
        %v962 = vsel %vm820, %v957, 0
        %v965 = vsel %vm840, %v960, 0
        %967 = vmatpush.bf16.msra.mxu0 0
        %968 = vmatpush.bf16.msra.mxu0 0
        %969 = vmatpush.bf16.msra.mxu0 0
        %970 = vmatpush.bf16.msra.mxu0 0
        %971 = vmatpush.bf16.msra.mxu0 0
        %972 = vmatpush.bf16.msra.mxu0 0
        %973 = vmatpush.bf16.msra.mxu0 0
        %974 = vmatpush.bf16.msra.mxu0 %v965
        %975 = vmatmul.bf16.gmra.mxu0 %v962
        %v976 = vpop.f32.mrf.mxu0
        %v977 = vadd.f32 0.0, %v976
        %v978 = vpop.f32.mrf.mxu0
        %979 = vdwg.mxu0
        %980 = vrot.lane.b32.xlu0 %v790, 48
        %v981 = vpop.permute.xlu0 %980
        %v983 = vsel %vm820, %v958, 0
        %v986 = vsel %vm840, %v981, 0
        %988 = vmatpush.bf16.msra.mxu0 0
        %989 = vmatpush.bf16.msra.mxu0 0
        %990 = vmatpush.bf16.msra.mxu0 0
        %991 = vmatpush.bf16.msra.mxu0 0
        %992 = vmatpush.bf16.msra.mxu0 0
        %993 = vmatpush.bf16.msra.mxu0 0
        %994 = vmatpush.bf16.msra.mxu0 0
        %995 = vmatpush.bf16.msra.mxu0 %v986
        %996 = vmatmul.bf16.gmra.mxu0 %v983
        %v997 = vpop.f32.mrf.mxu0
        %v998 = vadd.f32 0.0, %v997
        %v999 = vpop.f32.mrf.mxu0
        %1000 = vdwg.mxu0
        %v1001 = vsel %vm820, %v954, 0.0
        %1002 = vadd.xlane.f32.xlu0 %v1001
        %v1003 = vpop.xlane.xlu0 %1002
        %v1004 = vsel %vm820, %v956, 0.0
        %1005 = vadd.xlane.f32.xlu0 %v1004
        %v1006 = vpop.xlane.xlu0 %1005
        %v1007 = vrcp.pop %v1003
        %v1008 = vrcp.pop %v1006
        %v1009 = vmul.f32 %v977, %v1007
        %v1010 = vmul.f32 %v998, %v1008
        %v1011 = vpack.c.bf16 %v1010, %v1009
        %v1012 = vld [vmem:[%s650 + $0x8] sm:$0xf]
        %v1013 = vld [vmem:[%s650 + $0xc] sm:$0xf]
        %v1016 = vunpack.c.l.b16 %v1012
        %v1017 = vunpack.c.l.b16 %v1013
        %v1018 = vpack.c.b16 %v1017, %v1016
        %v1021 = vsel %vm768, %v1011, 0
        %1023 = vmatpush.bf16.msra.mxu0 0
        %1024 = vmatpush.bf16.msra.mxu0 0
        %1025 = vmatpush.bf16.msra.mxu0 0
        %1026 = vmatpush.bf16.msra.mxu0 0
        %1027 = vmatpush.bf16.msra.mxu0 0
        %1028 = vmatpush.bf16.msra.mxu0 0
        %1029 = vmatpush.bf16.msra.mxu0 0
        %1030 = vmatpush.bf16.msra.mxu0 %v1018
        %1031 = vmatmul.bf16.gmra.mxu0 %v1021
        %v1032 = vpop.f32.mrf.mxu0
        %v1033 = vadd.f32 0.0, %v1032
        %v1034 = vpop.f32.mrf.mxu0
        %v1035 = vadd.f32 0.0, %v1034
        %1036 = vdwg.mxu0
        %v1039 = vunpack.c.l.b16 %v889
        %v1040 = vunpack.c.l.b16 %v890
        %v1041 = vpack.c.b16 %v1040, %v1039
        %v1044 = vsel %vm768, %v888, 0
        %1046 = vmatpush.bf16.msra.mxu0 0
        %1047 = vmatpush.bf16.msra.mxu0 0
        %1048 = vmatpush.bf16.msra.mxu0 0
        %1049 = vmatpush.bf16.msra.mxu0 0
        %1050 = vmatpush.bf16.msra.mxu0 0
        %1051 = vmatpush.bf16.msra.mxu0 0
        %1052 = vmatpush.bf16.msra.mxu0 0
        %1053 = vmatpush.bf16.msra.mxu0 %v1041
        %1054 = vmatmul.bf16.gmra.mxu0 %v1044
        %v1055 = vpop.f32.mrf.mxu0
        %v1056 = vadd.f32 %v1033, %v1055
        %v1057 = vpop.f32.mrf.mxu0
        %v1058 = vadd.f32 %v1035, %v1057
        %1059 = vdwg.mxu0
        %v1060 = vld [vmem:[%s653] sm:$0x1]
        %v1062 = vperm.slane %v1060, 0
        %v1064 = vadd.f32 %v1056, %v1062
        %v1065 = vadd.f32 %v1058, %v1062
        %v1066 = vadd.f32 %v712, %v1064
        %v1067 = vadd.f32 %v713, %v1065
        %v1068 = vsel %vm735, %v1066, 0.0
        %1069 = vadd.xlane.f32.xlu0 %v1068
        %v1070 = vpop.xlane.xlu0 %1069
        %v1071 = vsel %vm735, %v1067, 0.0
        %1072 = vadd.xlane.f32.xlu0 %v1071
        %v1073 = vpop.xlane.xlu0 %1072
        %v1074 = vrcp.pop 32.0
        %v1075 = vmul.f32 32.0, %v1074
        %v1076 = vsub.f32 1.0, %v1075
        %v1077 = vmul.f32 %v1074, %v1076
        %v1078 = vadd.f32 %v1074, %v1077
        %vm1079 = vweird.f32 %v1074
        %v1080 = vsel %vm1079, %v1074, %v1078
        %v1081 = vmul.f32 %v1070, %v1080
        %v1082 = vmul.f32 %v1073, %v1080
        %v1083 = vsub.f32 %v1066, %v1081
        %v1084 = vsub.f32 %v1067, %v1082
        %v1085 = vmul.f32 %v1083, %v1083
        %v1086 = vmul.f32 %v1084, %v1084
        %v1087 = vsel %vm735, %v1085, 0.0
        %1088 = vadd.xlane.f32.xlu0 %v1087
        %v1089 = vpop.xlane.xlu0 %1088
        %v1090 = vsel %vm735, %v1086, 0.0
        %1091 = vadd.xlane.f32.xlu0 %v1090
        %v1092 = vpop.xlane.xlu0 %1091
        %v1093 = vmul.f32 %v1089, %v1080
        %v1094 = vmul.f32 %v1092, %v1080
        %v1095 = vadd.f32 %v1093, 1e-05
        %v1096 = vadd.f32 %v1094, 1e-05
        %v1097 = vrsqrt.pop %v1095
        %v1098 = vmul.f32 %v1097, %v1095
        %v1099 = vmul.f32 %v1098, %v1097
        %v1100 = vmul.f32 0.5, %v1099
        %v1101 = vsub.f32 1.5, %v1100
        %v1102 = vmul.f32 %v1097, %v1101
        %vm1103 = vweird.f32 %v1095
        %vm1104 = vweird.f32 %v1097
        %vm1105 = vmor %vm1103, %vm1104
        %v1106 = vsel %vm1105, %v1097, %v1102
        %v1107 = vrsqrt.pop %v1096
        %v1108 = vmul.f32 %v1107, %v1096
        %v1109 = vmul.f32 %v1108, %v1107
        %v1110 = vmul.f32 0.5, %v1109
        %v1111 = vsub.f32 1.5, %v1110
        %v1112 = vmul.f32 %v1107, %v1111
        %vm1113 = vweird.f32 %v1096
        %vm1114 = vweird.f32 %v1107
        %vm1115 = vmor %vm1113, %vm1114
        %v1116 = vsel %vm1115, %v1107, %v1112
        %v1117 = vmul.f32 %v1083, %v1106
        %v1118 = vmul.f32 %v1084, %v1116
        %v1119 = vld [vmem:[%s656] sm:$0x1]
        %v1121 = vperm.slane %v1119, 0
        %v1123 = vmul.f32 %v1117, %v1121
        %v1124 = vmul.f32 %v1118, %v1121
        %v1125 = vld [vmem:[%s659] sm:$0x1]
        %v1127 = vperm.slane %v1125, 0
        %v1129 = vadd.f32 %v1123, %v1127
        %v1130 = vadd.f32 %v1124, %v1127
        %v1131 = vpack.c.bf16 %v1130, %v1129
        %v1132 = vld [vmem:[%s664] sm:$0xf]
        %v1133 = vld [vmem:[%s664 + $0x4] sm:$0xf]
        %v1134 = vld [vmem:[%s664 + $0x8] sm:$0xf]
        %v1135 = vld [vmem:[%s664 + $0xc] sm:$0xf]
        %v1136 = vld [vmem:[%s667] sm:$0x1]
        %v1138 = vperm.slane %v1136, 0
        %v1144 = vunpack.c.l.b16 %v1132
        %v1145 = vunpack.c.l.b16 %v1133
        %v1146 = vunpack.c.l.b16 %v1134
        %v1147 = vunpack.c.l.b16 %v1135
        %v1148 = vpack.c.b16 %v1145, %v1144
        %v1149 = vpack.c.b16 %v1147, %v1146
        %v1153 = vsel %vm735, %v1131, 0
        %1155 = vmatpush.bf16.msra.mxu0 0
        %1156 = vmatpush.bf16.msra.mxu0 0
        %1157 = vmatpush.bf16.msra.mxu0 0
        %1158 = vmatpush.bf16.msra.mxu0 0
        %1159 = vmatpush.bf16.msra.mxu0 0
        %1160 = vmatpush.bf16.msra.mxu0 0
        %1161 = vmatpush.bf16.msra.mxu0 %v1149
        %1162 = vmatpush.bf16.msra.mxu0 %v1148
        %1163 = vmatmul.bf16.gmra.mxu0 %v1153
        %v1164 = vpop.f32.mrf.mxu0
        %v1165 = vadd.f32 %v1138, %v1164
        %v1166 = vpop.f32.mrf.mxu0
        %v1167 = vadd.f32 %v1138, %v1166
        %1168 = vdwg.mxu0
        %v1169 = vmax.f32 %v1165, 0.0
        %v1170 = vmax.f32 %v1167, 0.0
        %v1171 = vpack.c.bf16 %v1170, %v1169
        %v1172 = vld [vmem:[%s672] sm:$0xf]
        %v1173 = vld [vmem:[%s672 + $0x4] sm:$0xf]
        %v1174 = vld [vmem:[%s672 + $0x8] sm:$0xf]
        %v1175 = vld [vmem:[%s672 + $0xc] sm:$0xf]
        %v1176 = vld [vmem:[%s672 + $0x10] sm:$0xf]
        %v1177 = vld [vmem:[%s672 + $0x14] sm:$0xf]
        %v1178 = vld [vmem:[%s672 + $0x18] sm:$0xf]
        %v1179 = vld [vmem:[%s672 + $0x1c] sm:$0xf]
        %v1180 = vld [vmem:[%s675] sm:$0x1]
        %v1182 = vperm.slane %v1180, 0
        %v1192 = vunpack.c.l.b16 %v1172
        %v1193 = vunpack.c.l.b16 %v1173
        %v1194 = vunpack.c.l.b16 %v1174
        %v1195 = vunpack.c.l.b16 %v1175
        %v1196 = vunpack.c.l.b16 %v1176
        %v1197 = vunpack.c.l.b16 %v1177
        %v1198 = vunpack.c.l.b16 %v1178
        %v1199 = vunpack.c.l.b16 %v1179
        %v1200 = vpack.c.b16 %v1193, %v1192
        %v1201 = vpack.c.b16 %v1195, %v1194
        %v1202 = vpack.c.b16 %v1197, %v1196
        %v1203 = vpack.c.b16 %v1199, %v1198
        %vm1208 = vcmask 523264
        %v1210 = vsel %vm1208, %v1171, 0
        %1212 = vmatpush.bf16.msra.mxu0 0
        %1213 = vmatpush.bf16.msra.mxu0 0
        %1214 = vmatpush.bf16.msra.mxu0 0
        %1215 = vmatpush.bf16.msra.mxu0 0
        %1216 = vmatpush.bf16.msra.mxu0 %v1203
        %1217 = vmatpush.bf16.msra.mxu0 %v1202
        %1218 = vmatpush.bf16.msra.mxu0 %v1201
        %1219 = vmatpush.bf16.msra.mxu0 %v1200
        %1220 = vmatmul.bf16.gmra.mxu0 %v1210
        %v1221 = vpop.f32.mrf.mxu0
        %v1222 = vadd.f32 %v1182, %v1221
        %v1223 = vpop.f32.mrf.mxu0
        %v1224 = vadd.f32 %v1182, %v1223
        %1225 = vdwg.mxu0
        %v1226 = vadd.f32 %v1129, %v1222
        %v1227 = vadd.f32 %v1130, %v1224
        %v1228 = vsel %vm735, %v1226, 0.0
        %1229 = vadd.xlane.f32.xlu0 %v1228
        %v1230 = vpop.xlane.xlu0 %1229
        %v1231 = vsel %vm735, %v1227, 0.0
        %1232 = vadd.xlane.f32.xlu0 %v1231
        %v1233 = vpop.xlane.xlu0 %1232
        %v1234 = vmul.f32 %v1230, %v1080
        %v1235 = vmul.f32 %v1233, %v1080
        %v1236 = vsub.f32 %v1226, %v1234
        %v1237 = vsub.f32 %v1227, %v1235
        %v1238 = vmul.f32 %v1236, %v1236
        %v1239 = vmul.f32 %v1237, %v1237
        %v1240 = vsel %vm735, %v1238, 0.0
        %1241 = vadd.xlane.f32.xlu0 %v1240
        %v1242 = vpop.xlane.xlu0 %1241
        %v1243 = vsel %vm735, %v1239, 0.0
        %1244 = vadd.xlane.f32.xlu0 %v1243
        %v1245 = vpop.xlane.xlu0 %1244
        %v1246 = vmul.f32 %v1242, %v1080
        %v1247 = vmul.f32 %v1245, %v1080
        %v1248 = vadd.f32 %v1246, 1e-05
        %v1249 = vadd.f32 %v1247, 1e-05
        %v1250 = vrsqrt.pop %v1248
        %v1251 = vmul.f32 %v1250, %v1248
        %v1252 = vmul.f32 %v1251, %v1250
        %v1253 = vmul.f32 0.5, %v1252
        %v1254 = vsub.f32 1.5, %v1253
        %v1255 = vmul.f32 %v1250, %v1254
        %vm1256 = vweird.f32 %v1248
        %vm1257 = vweird.f32 %v1250
        %vm1258 = vmor %vm1256, %vm1257
        %v1259 = vsel %vm1258, %v1250, %v1255
        %v1260 = vrsqrt.pop %v1249
        %v1261 = vmul.f32 %v1260, %v1249
        %v1262 = vmul.f32 %v1261, %v1260
        %v1263 = vmul.f32 0.5, %v1262
        %v1264 = vsub.f32 1.5, %v1263
        %v1265 = vmul.f32 %v1260, %v1264
        %vm1266 = vweird.f32 %v1249
        %vm1267 = vweird.f32 %v1260
        %vm1268 = vmor %vm1266, %vm1267
        %v1269 = vsel %vm1268, %v1260, %v1265
        %v1270 = vmul.f32 %v1236, %v1259
        %v1271 = vmul.f32 %v1237, %v1269
        %v1272 = vld [vmem:[%s678] sm:$0x1]
        %v1274 = vperm.slane %v1272, 0
        %v1276 = vmul.f32 %v1270, %v1274
        %v1277 = vmul.f32 %v1271, %v1274
        %v1278 = vld [vmem:[%s681] sm:$0x1]
        %v1280 = vperm.slane %v1278, 0
        %v1282 = vadd.f32 %v1276, %v1280
        %v1283 = vadd.f32 %v1277, %v1280
        %1284 = vst.msk [vmem:[#allocation3] sm:$0xff] %vm735, %v1282
        %1285 = vst.msk [vmem:[#allocation3 + $0x8] sm:$0xff] %vm735, %v1283
        // Predicated region
        $region81: #{roberta_encoder_forward.1} parent=75 // pred_check
          %p1286 = pneg %p420
        $region82: #{roberta_encoder_forward.1} parent=75 // pred_check_branch
          %1288 = sbr.rel (%p1286) target = $region84
        $region83: #{roberta_encoder_forward.1} parent=75 // pred_region
          %s1289 = smul.u32 2, %s30
          %1291 = vsyncadd [#allocation4], 0
          %s1292 = smul.addr %s1289, 8
          %s1293 = scalar_lea.hbm %s14, %s1292
          %s1294 = sshll.u32 [#allocation3], 4
          %s1295 = int_to_ptr.vmem [resolvable:$true] %s1294
          %s1296 = sshll.u32 %s1293, 4
          %s1297 = int_to_ptr.hbm [resolvable:$true] %s1296
          %1302 = dma.vmem_to_hbm [thread:$0]  %s1295, 256, %s1297, [#allocation4], 128, 128, 8
        $region84: #{roberta_encoder_forward.1} parent=75 // pred_fallthru
          _
        // Predicated region
        $region85: #{roberta_encoder_forward.1} parent=75 // pred_check
          %p1303 = pneg %p420
        $region86: #{roberta_encoder_forward.1} parent=75 // pred_check_branch
          %1305 = sbr.rel (%p1303) target = $region88
        $region87: #{roberta_encoder_forward.1} parent=75 // pred_region
          %1307 = dma.done [#allocation4], 256
        $region88: #{roberta_encoder_forward.1} parent=75 // pred_fallthru
          _
      $region76: #{roberta_encoder_forward.1} parent=5 // pred_fallthru
        _
      %p1308 = scmp.le.s32.totalorder 2, %s21
      // Predicated region
      $region89: #{roberta_encoder_forward.1} parent=5 // pred_check
        %p1309 = pneg %p1308
      $region90: #{roberta_encoder_forward.1} parent=5 // pred_check_branch
        %1311 = sbr.rel (%p1309) target = $region92
      $region91: #{roberta_encoder_forward.1} parent=5 // pred_region
        %s1312 = ssub.s32 %s21, 2
      $region92: #{roberta_encoder_forward.1} parent=5 // pred_fallthru
        _
    $region6: #{roberta_encoder_forward.1} parent=1 // loop_footer
      %s25 = sadd.s32 1, %s21
    $region7: #{roberta_encoder_forward.1} parent=1 // loop_footer_branch
      %20 = sbr.rel target = $region3
    $region8: #{roberta_encoder_forward.1} parent=1 // loop_exit
      _
    %1313 = vsyncpa [#allocation4], 1
    %s1314 = scalar_lea.sflag [#allocation4], 1
    %1315 = vsyncpa %s1314, 1

</llo_original>
